<compile_context>
chip_gen: v7x
topology: tpu7x:2x2x1
jax: 0.10.0
libtpu: 0.0.40
codegen_flags: <defaults>
</compile_context>

<pallas_src>
import functools

import jax
import jax.numpy as jnp
from jax import lax
from jax.experimental import pallas as pl
from jax.experimental.pallas import tpu as pltpu


def _leaky_relu(v, slope=0.1):
    return jnp.where(v > 0, v, slope * v)


# Batched "A @ B^T": contract last dims, batch over dim 0.
_NT_DIMS = (((2,), (2,)), ((0,), (0,)))


def _scorer_kernel(n_labels, d_arc, d_lab,
                   x_ref, wmlp_ref, bmlp_ref, warc_ref, wlab_ref,
                   span_ref, ph_ref, pt_ref, lab_ref):
    """One grid step processes a block of B batch elements.

    d_arc = biaffine_dim + 1, d_lab = biaffine_label_dim + 1 (ones folded in).
    """
    f32 = jnp.float32
    B, seq, d_in = x_ref.shape

    x = x_ref[...].reshape(B * seq, d_in)

    # ---- Fused MLPs (Linear + LeakyReLU(0.1)), ones column folded in --------
    h = jnp.dot(x, wmlp_ref[...], preferred_element_type=f32) + bmlp_ref[...]
    h = _leaky_relu(h)                              # LeakyReLU(1) == 1 -> exact

    o = 0
    sl1 = h[:, o:o + d_arc]; o += d_arc             # [B*seq, d_arc]
    sr1 = h[:, o:o + d_arc]; o += d_arc
    sll1 = h[:, o:o + d_lab]; o += d_lab            # [B*seq, d_lab]
    srl1 = h[:, o:o + d_lab]

    sl1_b = sl1.reshape(B, seq, d_arc)
    sr1_b = sr1.reshape(B, seq, d_arc)
    srl1_b = srl1.reshape(B, seq, d_lab)

    # ---- Arc biaffines: fused first stage, batched NT second stages ---------
    u = jnp.dot(sl1, warc_ref[...], preferred_element_type=f32)  # [B*seq, 3*d_arc]
    u_span = u[:, 0 * d_arc:1 * d_arc].reshape(B, seq, d_arc)
    u_ph = u[:, 1 * d_arc:2 * d_arc].reshape(B, seq, d_arc)
    u_pt = u[:, 2 * d_arc:3 * d_arc].reshape(B, seq, d_arc)

    span_raw = lax.dot_general(u_span, sr1_b, _NT_DIMS, preferred_element_type=f32)
    ph = lax.dot_general(u_ph, sl1_b, _NT_DIMS, preferred_element_type=f32)
    pt = lax.dot_general(u_pt, sr1_b, _NT_DIMS, preferred_element_type=f32)

    # span = triu(S) + triu(S, 1)^T  ==  where(col >= row, S, S^T)
    row = lax.broadcasted_iota(jnp.int32, (seq, seq), 0)
    col = lax.broadcasted_iota(jnp.int32, (seq, seq), 1)
    upper = (col >= row)[None, :, :]
    span_ref[...] = jnp.where(upper, span_raw, jnp.swapaxes(span_raw, 1, 2))
    ph_ref[...] = ph
    pt_ref[...] = pt

    # ---- Label biaffine: one fused first stage, one batched NT dot per label.
    # Output layout is [B, n_labels, seq, seq] (lane-dense seq last); the
    # channels-last permute happens in the wrapper.
    v = jnp.dot(sll1, wlab_ref[...], preferred_element_type=f32)  # [B*seq, n_labels*d_lab]
    for lbl in range(n_labels):                                   # small static unroll
        v_l = v[:, lbl * d_lab:(lbl + 1) * d_lab].reshape(B, seq, d_lab)
        lab_ref[:, lbl, :, :] = lax.dot_general(v_l, srl1_b, _NT_DIMS,
                                                preferred_element_type=f32)


def srl_first_order_scorer(x, params, n_span_labels, batch_block=1):
    """x: [bsz, seq, input_dim] f32. Returns (span, ph, pt, span_label)."""
    bsz, seq, d_in = x.shape
    (wsl, bsl, wsr, bsr, wsll, bsll, wsrl, bsrl, wspan, wph, wpt, wlab) = params
    f = jnp.float32

    d_arc = wspan.shape[0]       # biaffine_dim + 1
    d_lab = wlab.shape[1]        # biaffine_label_dim + 1

    # Fold the Biaffine "ones" column into each MLP: one extra output unit with
    # zero weights and bias 1 (exact under LeakyReLU).
    z_arc = jnp.zeros((d_in, 1), f)
    z_lab = jnp.zeros((d_in, 1), f)
    one = jnp.ones((1, 1), f)
    wmlp = jnp.concatenate([wsl, z_arc, wsr, z_arc, wsll, z_lab, wsrl, z_lab], axis=1)
    bmlp = jnp.concatenate([bsl, one, bsr, one, bsll, one, bsrl, one], axis=1)

    # Fuse the three arc-biaffine first stages; flatten the label weights so the
    # label first stage is a single matmul.
    warc = jnp.concatenate([wspan, wph, wpt], axis=1)                       # [d_arc, 3*d_arc]
    wlab_flat = jnp.transpose(wlab, (1, 0, 2)).reshape(d_lab, n_span_labels * d_lab)

    if batch_block is None or batch_block > bsz:
        batch_block = bsz
    assert bsz % batch_block == 0
    grid = (bsz // batch_block,)

    def full_spec(a):
        nd = a.ndim
        return pl.BlockSpec(a.shape, lambda i, _nd=nd: (0,) * _nd)

    in_specs = [
        pl.BlockSpec((batch_block, seq, d_in), lambda i: (i, 0, 0)),
        full_spec(wmlp), full_spec(bmlp), full_spec(warc), full_spec(wlab_flat),
    ]
    out_specs = [
        pl.BlockSpec((batch_block, seq, seq), lambda i: (i, 0, 0)),
        pl.BlockSpec((batch_block, seq, seq), lambda i: (i, 0, 0)),
        pl.BlockSpec((batch_block, seq, seq), lambda i: (i, 0, 0)),
        pl.BlockSpec((batch_block, n_span_labels, seq, seq), lambda i: (i, 0, 0, 0)),
    ]
    out_shape = (
        jax.ShapeDtypeStruct((bsz, seq, seq), f),
        jax.ShapeDtypeStruct((bsz, seq, seq), f),
        jax.ShapeDtypeStruct((bsz, seq, seq), f),
        jax.ShapeDtypeStruct((bsz, n_span_labels, seq, seq), f),
    )

    kernel = functools.partial(_scorer_kernel, n_span_labels, d_arc, d_lab)
    span, ph, pt, lab = pl.pallas_call(
        kernel,
        out_shape=out_shape,
        grid_spec=pltpu.PrefetchScalarGridSpec(
            num_scalar_prefetch=0,
            grid=grid,
            in_specs=in_specs,
            out_specs=out_specs,
        ),
        compiler_params=pltpu.CompilerParams(
            dimension_semantics=("parallel",),
            vmem_limit_bytes=32 * 1024 * 1024,
        ),
    )(x, wmlp, bmlp, warc, wlab_flat)

    # Module returns span_label channels-last; do the permute outside the kernel
    # so in-kernel stores stay lane-dense (seq on the lane axis).
    return span, ph, pt, jnp.transpose(lab, (0, 2, 3, 1))


# --------------------------- reference (plain JAX) ---------------------------
def _reference(x, params, n_span_labels):
    (wsl, bsl, wsr, bsr, wsll, bsll, wsrl, bsrl, wspan, wph, wpt, wlab) = params

    def mlp(x, w, b):
        return _leaky_relu(x @ w + b)

    def biaffine(h, m, w):  # w: [d+1, d+1]
        h1 = jnp.concatenate([h, jnp.ones(h.shape[:-1] + (1,), h.dtype)], -1)
        m1 = jnp.concatenate([m, jnp.ones(m.shape[:-1] + (1,), m.dtype)], -1)
        return jnp.einsum('bxi,ij,byj->bxy', h1, w, m1)

    sl, sr = mlp(x, wsl, bsl), mlp(x, wsr, bsr)
    sll, srl = mlp(x, wsll, bsll), mlp(x, wsrl, bsrl)

    span = biaffine(sl, sr, wspan)
    span = jnp.triu(span) + jnp.swapaxes(jnp.triu(span, 1), -1, -2)
    ph = biaffine(sl, sl, wph)
    pt = biaffine(sl, sr, wpt)

    h1 = jnp.concatenate([sll, jnp.ones(sll.shape[:-1] + (1,), sll.dtype)], -1)
    m1 = jnp.concatenate([srl, jnp.ones(srl.shape[:-1] + (1,), srl.dtype)], -1)
    lab = jnp.einsum('bxi,oij,byj->bxyo', h1, wlab, m1)
    return span, ph, pt, lab


if __name__ == "__main__":
    # conf: span_n_out=1, arc_n_out=1, biaffine_dim=32, biaffine_label_dim=16
    bsz, seq, d_in = 2, 8, 32
    biaffine_dim, biaffine_label_dim, n_span_labels = 32, 16, 6

    key = jax.random.PRNGKey(0)
    ks = jax.random.split(key, 16)
    f = jnp.float32

    x = jax.random.normal(ks[0], (bsz, seq, d_in), dtype=f)

    # Linear weights pre-transposed to [d_in, d_out]; biases as [1, d_out].
    params = (
        0.1 * jax.random.normal(ks[1], (d_in, biaffine_dim), f),
        0.1 * jax.random.normal(ks[2], (1, biaffine_dim), f),
        0.1 * jax.random.normal(ks[3], (d_in, biaffine_dim), f),
        0.1 * jax.random.normal(ks[4], (1, biaffine_dim), f),
        0.1 * jax.random.normal(ks[5], (d_in, biaffine_label_dim), f),
        0.1 * jax.random.normal(ks[6], (1, biaffine_label_dim), f),
        0.1 * jax.random.normal(ks[7], (d_in, biaffine_label_dim), f),
        0.1 * jax.random.normal(ks[8], (1, biaffine_label_dim), f),
        0.1 * jax.random.normal(ks[9], (biaffine_dim + 1, biaffine_dim + 1), f),   # span_att
        0.1 * jax.random.normal(ks[10], (biaffine_dim + 1, biaffine_dim + 1), f),  # ph_att
        0.1 * jax.random.normal(ks[11], (biaffine_dim + 1, biaffine_dim + 1), f),  # pt_att
        0.1 * jax.random.normal(ks[12],
                                (n_span_labels, biaffine_label_dim + 1, biaffine_label_dim + 1),
                                f),                                                # span_labels_att
    )

    outs = srl_first_order_scorer(x, params, n_span_labels)
    outs = jax.block_until_ready(outs)

    refs = _reference(x, params, n_span_labels)
    for o, r in zip(outs, refs):
        assert o.shape == r.shape, (o.shape, r.shape)
        assert jnp.allclose(o, r, atol=1e-4, rtol=1e-4), float(jnp.max(jnp.abs(o - r)))

    print("KERNEL_OK")
</pallas_src>

<mosaic_0001>
module attributes {stable_mosaic.version = 11 : i64} {
  func.func @_scorer_kernel(%arg0: i32, %arg1: memref<1x8x32xf32, #tpu.memory_space<vmem>>, %arg2: memref<32x100xf32, #tpu.memory_space<vmem>>, %arg3: memref<1x100xf32, #tpu.memory_space<vmem>>, %arg4: memref<33x99xf32, #tpu.memory_space<vmem>>, %arg5: memref<17x102xf32, #tpu.memory_space<vmem>>, %arg6: memref<1x8x8xf32, #tpu.memory_space<vmem>>, %arg7: memref<1x8x8xf32, #tpu.memory_space<vmem>>, %arg8: memref<1x8x8xf32, #tpu.memory_space<vmem>>, %arg9: memref<1x6x8x8xf32, #tpu.memory_space<vmem>>) attributes {dimension_semantics = [#tpu.dimension_semantics<parallel>], iteration_bounds = array<i64: 2>, scalar_prefetch = 0 : i64, scratch_operands = 0 : i64, tpu.core_type = #tpu.core_type<tc>, window_params = [{transform_indices = @transform_0, window_bounds = array<i64: 1, 8, 32>}, {pipeline_mode = #tpu.pipeline_mode<synchronous>, transform_indices = @transform_1, window_bounds = array<i64: 32, 100>}, {pipeline_mode = #tpu.pipeline_mode<synchronous>, transform_indices = @transform_2, window_bounds = array<i64: 1, 100>}, {pipeline_mode = #tpu.pipeline_mode<synchronous>, transform_indices = @transform_3, window_bounds = array<i64: 33, 99>}, {pipeline_mode = #tpu.pipeline_mode<synchronous>, transform_indices = @transform_4, window_bounds = array<i64: 17, 102>}, {transform_indices = @transform_5, window_bounds = array<i64: 1, 8, 8>}, {transform_indices = @transform_6, window_bounds = array<i64: 1, 8, 8>}, {transform_indices = @transform_7, window_bounds = array<i64: 1, 8, 8>}, {transform_indices = @transform_8, window_bounds = array<i64: 1, 6, 8, 8>}]} {
    %c0 = arith.constant 0 : index
    %c0_0 = arith.constant 0 : index
    %c0_1 = arith.constant 0 : index
    %0 = vector.load %arg1[%c0, %c0_0, %c0_1] : memref<1x8x32xf32, #tpu.memory_space<vmem>>, vector<1x8x32xf32>
    %1 = vector.shape_cast %0 : vector<1x8x32xf32> to vector<8x32xf32>
    %c0_2 = arith.constant 0 : index
    %c0_3 = arith.constant 0 : index
    %2 = vector.load %arg2[%c0_2, %c0_3] : memref<32x100xf32, #tpu.memory_space<vmem>>, vector<32x100xf32>
    %cst = arith.constant dense<0.000000e+00> : vector<8x100xf32>
    %3 = tpu.matmul %1, %2, %cst {dimension_numbers = #tpu.dot_dimension_numbers<[1], [0], [0], [1], [0, 0, 1, 1], [], []>} : vector<8x32xf32>, vector<32x100xf32>, vector<8x100xf32> -> vector<8x100xf32>
    %c0_4 = arith.constant 0 : index
    %c0_5 = arith.constant 0 : index
    %4 = vector.load %arg3[%c0_4, %c0_5] : memref<1x100xf32, #tpu.memory_space<vmem>>, vector<1x100xf32>
    %5 = vector.broadcast %4 : vector<1x100xf32> to vector<8x100xf32>
    %6 = arith.addf %3, %5 : vector<8x100xf32>
    %cst_6 = arith.constant 0.000000e+00 : f32
    %7 = vector.broadcast %cst_6 : f32 to vector<8x100xf32>
    %8 = arith.cmpf ogt, %6, %7 : vector<8x100xf32>
    %cst_7 = arith.constant 1.000000e-01 : f32
    %9 = vector.broadcast %cst_7 : f32 to vector<8x100xf32>
    %10 = arith.mulf %9, %6 : vector<8x100xf32>
    %11 = arith.select %8, %6, %10 : vector<8x100xi1>, vector<8x100xf32>
    %12 = vector.extract_strided_slice %11 {offsets = [0, 0], sizes = [8, 33], strides = [1, 1]} : vector<8x100xf32> to vector<8x33xf32>
    %13 = vector.extract_strided_slice %11 {offsets = [0, 33], sizes = [8, 33], strides = [1, 1]} : vector<8x100xf32> to vector<8x33xf32>
    %14 = vector.extract_strided_slice %11 {offsets = [0, 66], sizes = [8, 17], strides = [1, 1]} : vector<8x100xf32> to vector<8x17xf32>
    %15 = vector.extract_strided_slice %11 {offsets = [0, 83], sizes = [8, 17], strides = [1, 1]} : vector<8x100xf32> to vector<8x17xf32>
    %16 = vector.shape_cast %12 : vector<8x33xf32> to vector<1x8x33xf32>
    %17 = vector.shape_cast %13 : vector<8x33xf32> to vector<1x8x33xf32>
    %18 = vector.shape_cast %15 : vector<8x17xf32> to vector<1x8x17xf32>
    %c0_8 = arith.constant 0 : index
    %c0_9 = arith.constant 0 : index
    %19 = vector.load %arg4[%c0_8, %c0_9] : memref<33x99xf32, #tpu.memory_space<vmem>>, vector<33x99xf32>
    %cst_10 = arith.constant dense<0.000000e+00> : vector<8x99xf32>
    %20 = tpu.matmul %12, %19, %cst_10 {dimension_numbers = #tpu.dot_dimension_numbers<[1], [0], [0], [1], [0, 0, 1, 1], [], []>} : vector<8x33xf32>, vector<33x99xf32>, vector<8x99xf32> -> vector<8x99xf32>
    %21 = vector.extract_strided_slice %20 {offsets = [0, 0], sizes = [8, 33], strides = [1, 1]} : vector<8x99xf32> to vector<8x33xf32>
    %22 = vector.shape_cast %21 : vector<8x33xf32> to vector<1x8x33xf32>
    %23 = vector.extract_strided_slice %20 {offsets = [0, 33], sizes = [8, 33], strides = [1, 1]} : vector<8x99xf32> to vector<8x33xf32>
    %24 = vector.shape_cast %23 : vector<8x33xf32> to vector<1x8x33xf32>
    %25 = vector.extract_strided_slice %20 {offsets = [0, 66], sizes = [8, 33], strides = [1, 1]} : vector<8x99xf32> to vector<8x33xf32>
    %26 = vector.shape_cast %25 : vector<8x33xf32> to vector<1x8x33xf32>
    %cst_11 = arith.constant dense<0.000000e+00> : vector<1x8x8xf32>
    %27 = tpu.matmul %22, %17, %cst_11 {dimension_numbers = #tpu.dot_dimension_numbers<[2], [2], [1], [1], [0, 0, 0, 1, 1, 1], [0], [0]>} : vector<1x8x33xf32>, vector<1x8x33xf32>, vector<1x8x8xf32> -> vector<1x8x8xf32>
    %cst_12 = arith.constant dense<0.000000e+00> : vector<1x8x8xf32>
    %28 = tpu.matmul %24, %16, %cst_12 {dimension_numbers = #tpu.dot_dimension_numbers<[2], [2], [1], [1], [0, 0, 0, 1, 1, 1], [0], [0]>} : vector<1x8x33xf32>, vector<1x8x33xf32>, vector<1x8x8xf32> -> vector<1x8x8xf32>
    %cst_13 = arith.constant dense<0.000000e+00> : vector<1x8x8xf32>
    %29 = tpu.matmul %26, %17, %cst_13 {dimension_numbers = #tpu.dot_dimension_numbers<[2], [2], [1], [1], [0, 0, 0, 1, 1, 1], [0], [0]>} : vector<1x8x33xf32>, vector<1x8x33xf32>, vector<1x8x8xf32> -> vector<1x8x8xf32>
    %30 = tpu.iota {dimensions = array<i32: 0>} : vector<8x8xi32>
    %31 = tpu.iota {dimensions = array<i32: 1>} : vector<8x8xi32>
    %32 = arith.cmpi sge, %31, %30 : vector<8x8xi32>
    %33 = vector.shape_cast %32 : vector<8x8xi1> to vector<1x8x8xi1>
    %34 = tpu.transpose %27, [0, 2, 1] : vector<1x8x8xf32> -> vector<1x8x8xf32>
    %35 = arith.select %33, %27, %34 : vector<1x8x8xi1>, vector<1x8x8xf32>
    %c0_14 = arith.constant 0 : index
    %c0_15 = arith.constant 0 : index
    %c0_16 = arith.constant 0 : index
    %36 = vector.load %arg6[%c0_14, %c0_15, %c0_16] : memref<1x8x8xf32, #tpu.memory_space<vmem>>, vector<1x8x8xf32>
    tpu.vector_store %arg6[%c0_14, %c0_15, %c0_16], %35 {strides = array<i32>} : memref<1x8x8xf32, #tpu.memory_space<vmem>>, vector<1x8x8xf32>,
    %c0_17 = arith.constant 0 : index
    %c0_18 = arith.constant 0 : index
    %c0_19 = arith.constant 0 : index
    %37 = vector.load %arg7[%c0_17, %c0_18, %c0_19] : memref<1x8x8xf32, #tpu.memory_space<vmem>>, vector<1x8x8xf32>
    tpu.vector_store %arg7[%c0_17, %c0_18, %c0_19], %28 {strides = array<i32>} : memref<1x8x8xf32, #tpu.memory_space<vmem>>, vector<1x8x8xf32>,
    %c0_20 = arith.constant 0 : index
    %c0_21 = arith.constant 0 : index
    %c0_22 = arith.constant 0 : index
    %38 = vector.load %arg8[%c0_20, %c0_21, %c0_22] : memref<1x8x8xf32, #tpu.memory_space<vmem>>, vector<1x8x8xf32>
    tpu.vector_store %arg8[%c0_20, %c0_21, %c0_22], %29 {strides = array<i32>} : memref<1x8x8xf32, #tpu.memory_space<vmem>>, vector<1x8x8xf32>,
    %c0_23 = arith.constant 0 : index
    %c0_24 = arith.constant 0 : index
    %39 = vector.load %arg5[%c0_23, %c0_24] : memref<17x102xf32, #tpu.memory_space<vmem>>, vector<17x102xf32>
    %cst_25 = arith.constant dense<0.000000e+00> : vector<8x102xf32>
    %40 = tpu.matmul %14, %39, %cst_25 {dimension_numbers = #tpu.dot_dimension_numbers<[1], [0], [0], [1], [0, 0, 1, 1], [], []>} : vector<8x17xf32>, vector<17x102xf32>, vector<8x102xf32> -> vector<8x102xf32>
    %41 = vector.extract_strided_slice %40 {offsets = [0, 0], sizes = [8, 17], strides = [1, 1]} : vector<8x102xf32> to vector<8x17xf32>
    %42 = vector.shape_cast %41 : vector<8x17xf32> to vector<1x8x17xf32>
    %cst_26 = arith.constant dense<0.000000e+00> : vector<1x8x8xf32>
    %43 = tpu.matmul %42, %18, %cst_26 {dimension_numbers = #tpu.dot_dimension_numbers<[2], [2], [1], [1], [0, 0, 0, 1, 1, 1], [0], [0]>} : vector<1x8x17xf32>, vector<1x8x17xf32>, vector<1x8x8xf32> -> vector<1x8x8xf32>
    %c0_27 = arith.constant 0 : index
    %c0_28 = arith.constant 0 : index
    %c0_29 = arith.constant 0 : index
    %c0_30 = arith.constant 0 : index
    %44 = vector.load %arg9[%c0_27, %c0_28, %c0_29, %c0_30] : memref<1x6x8x8xf32, #tpu.memory_space<vmem>>, vector<1x1x8x8xf32>
    %45 = vector.shape_cast %44 : vector<1x1x8x8xf32> to vector<1x8x8xf32>
    %46 = vector.shape_cast %43 : vector<1x8x8xf32> to vector<1x1x8x8xf32>
    tpu.vector_store %arg9[%c0_27, %c0_28, %c0_29, %c0_30], %46 {strides = array<i32>} : memref<1x6x8x8xf32, #tpu.memory_space<vmem>>, vector<1x1x8x8xf32>,
    %47 = vector.extract_strided_slice %40 {offsets = [0, 17], sizes = [8, 17], strides = [1, 1]} : vector<8x102xf32> to vector<8x17xf32>
    %48 = vector.shape_cast %47 : vector<8x17xf32> to vector<1x8x17xf32>
    %cst_31 = arith.constant dense<0.000000e+00> : vector<1x8x8xf32>
    %49 = tpu.matmul %48, %18, %cst_31 {dimension_numbers = #tpu.dot_dimension_numbers<[2], [2], [1], [1], [0, 0, 0, 1, 1, 1], [0], [0]>} : vector<1x8x17xf32>, vector<1x8x17xf32>, vector<1x8x8xf32> -> vector<1x8x8xf32>
    %c0_32 = arith.constant 0 : index
    %c1 = arith.constant 1 : index
    %c0_33 = arith.constant 0 : index
    %c0_34 = arith.constant 0 : index
    %50 = vector.load %arg9[%c0_32, %c1, %c0_33, %c0_34] : memref<1x6x8x8xf32, #tpu.memory_space<vmem>>, vector<1x1x8x8xf32>
    %51 = vector.shape_cast %50 : vector<1x1x8x8xf32> to vector<1x8x8xf32>
    %52 = vector.shape_cast %49 : vector<1x8x8xf32> to vector<1x1x8x8xf32>
    tpu.vector_store %arg9[%c0_32, %c1, %c0_33, %c0_34], %52 {strides = array<i32>} : memref<1x6x8x8xf32, #tpu.memory_space<vmem>>, vector<1x1x8x8xf32>,
    %53 = vector.extract_strided_slice %40 {offsets = [0, 34], sizes = [8, 17], strides = [1, 1]} : vector<8x102xf32> to vector<8x17xf32>
    %54 = vector.shape_cast %53 : vector<8x17xf32> to vector<1x8x17xf32>
    %cst_35 = arith.constant dense<0.000000e+00> : vector<1x8x8xf32>
    %55 = tpu.matmul %54, %18, %cst_35 {dimension_numbers = #tpu.dot_dimension_numbers<[2], [2], [1], [1], [0, 0, 0, 1, 1, 1], [0], [0]>} : vector<1x8x17xf32>, vector<1x8x17xf32>, vector<1x8x8xf32> -> vector<1x8x8xf32>
    %c0_36 = arith.constant 0 : index
    %c2 = arith.constant 2 : index
    %c0_37 = arith.constant 0 : index
    %c0_38 = arith.constant 0 : index
    %56 = vector.load %arg9[%c0_36, %c2, %c0_37, %c0_38] : memref<1x6x8x8xf32, #tpu.memory_space<vmem>>, vector<1x1x8x8xf32>
    %57 = vector.shape_cast %56 : vector<1x1x8x8xf32> to vector<1x8x8xf32>
    %58 = vector.shape_cast %55 : vector<1x8x8xf32> to vector<1x1x8x8xf32>
    tpu.vector_store %arg9[%c0_36, %c2, %c0_37, %c0_38], %58 {strides = array<i32>} : memref<1x6x8x8xf32, #tpu.memory_space<vmem>>, vector<1x1x8x8xf32>,
    %59 = vector.extract_strided_slice %40 {offsets = [0, 51], sizes = [8, 17], strides = [1, 1]} : vector<8x102xf32> to vector<8x17xf32>
    %60 = vector.shape_cast %59 : vector<8x17xf32> to vector<1x8x17xf32>
    %cst_39 = arith.constant dense<0.000000e+00> : vector<1x8x8xf32>
    %61 = tpu.matmul %60, %18, %cst_39 {dimension_numbers = #tpu.dot_dimension_numbers<[2], [2], [1], [1], [0, 0, 0, 1, 1, 1], [0], [0]>} : vector<1x8x17xf32>, vector<1x8x17xf32>, vector<1x8x8xf32> -> vector<1x8x8xf32>
    %c0_40 = arith.constant 0 : index
    %c3 = arith.constant 3 : index
    %c0_41 = arith.constant 0 : index
    %c0_42 = arith.constant 0 : index
    %62 = vector.load %arg9[%c0_40, %c3, %c0_41, %c0_42] : memref<1x6x8x8xf32, #tpu.memory_space<vmem>>, vector<1x1x8x8xf32>
    %63 = vector.shape_cast %62 : vector<1x1x8x8xf32> to vector<1x8x8xf32>
    %64 = vector.shape_cast %61 : vector<1x8x8xf32> to vector<1x1x8x8xf32>
    tpu.vector_store %arg9[%c0_40, %c3, %c0_41, %c0_42], %64 {strides = array<i32>} : memref<1x6x8x8xf32, #tpu.memory_space<vmem>>, vector<1x1x8x8xf32>,
    %65 = vector.extract_strided_slice %40 {offsets = [0, 68], sizes = [8, 17], strides = [1, 1]} : vector<8x102xf32> to vector<8x17xf32>
    %66 = vector.shape_cast %65 : vector<8x17xf32> to vector<1x8x17xf32>
    %cst_43 = arith.constant dense<0.000000e+00> : vector<1x8x8xf32>
    %67 = tpu.matmul %66, %18, %cst_43 {dimension_numbers = #tpu.dot_dimension_numbers<[2], [2], [1], [1], [0, 0, 0, 1, 1, 1], [0], [0]>} : vector<1x8x17xf32>, vector<1x8x17xf32>, vector<1x8x8xf32> -> vector<1x8x8xf32>
    %c0_44 = arith.constant 0 : index
    %c4 = arith.constant 4 : index
    %c0_45 = arith.constant 0 : index
    %c0_46 = arith.constant 0 : index
    %68 = vector.load %arg9[%c0_44, %c4, %c0_45, %c0_46] : memref<1x6x8x8xf32, #tpu.memory_space<vmem>>, vector<1x1x8x8xf32>
    %69 = vector.shape_cast %68 : vector<1x1x8x8xf32> to vector<1x8x8xf32>
    %70 = vector.shape_cast %67 : vector<1x8x8xf32> to vector<1x1x8x8xf32>
    tpu.vector_store %arg9[%c0_44, %c4, %c0_45, %c0_46], %70 {strides = array<i32>} : memref<1x6x8x8xf32, #tpu.memory_space<vmem>>, vector<1x1x8x8xf32>,
    %71 = vector.extract_strided_slice %40 {offsets = [0, 85], sizes = [8, 17], strides = [1, 1]} : vector<8x102xf32> to vector<8x17xf32>
    %72 = vector.shape_cast %71 : vector<8x17xf32> to vector<1x8x17xf32>
    %cst_47 = arith.constant dense<0.000000e+00> : vector<1x8x8xf32>
    %73 = tpu.matmul %72, %18, %cst_47 {dimension_numbers = #tpu.dot_dimension_numbers<[2], [2], [1], [1], [0, 0, 0, 1, 1, 1], [0], [0]>} : vector<1x8x17xf32>, vector<1x8x17xf32>, vector<1x8x8xf32> -> vector<1x8x8xf32>
    %c0_48 = arith.constant 0 : index
    %c5 = arith.constant 5 : index
    %c0_49 = arith.constant 0 : index
    %c0_50 = arith.constant 0 : index
    %74 = vector.load %arg9[%c0_48, %c5, %c0_49, %c0_50] : memref<1x6x8x8xf32, #tpu.memory_space<vmem>>, vector<1x1x8x8xf32>
    %75 = vector.shape_cast %74 : vector<1x1x8x8xf32> to vector<1x8x8xf32>
    %76 = vector.shape_cast %73 : vector<1x8x8xf32> to vector<1x1x8x8xf32>
    tpu.vector_store %arg9[%c0_48, %c5, %c0_49, %c0_50], %76 {strides = array<i32>} : memref<1x6x8x8xf32, #tpu.memory_space<vmem>>, vector<1x1x8x8xf32>,
    return
  }
  func.func @transform_0(%arg0: i32) -> (i32, i32, i32) {
    %c0_i32 = arith.constant 0 : i32
    %c0_i32_0 = arith.constant 0 : i32
    %c0_i32_1 = arith.constant 0 : i32
    return %arg0, %c0_i32, %c0_i32_0 : i32, i32, i32
  }
  func.func @transform_1(%arg0: i32) -> (i32, i32) {
    %c0_i32 = arith.constant 0 : i32
    %c0_i32_0 = arith.constant 0 : i32
    %c0_i32_1 = arith.constant 0 : i32
    return %c0_i32, %c0_i32_0 : i32, i32
  }
  func.func @transform_2(%arg0: i32) -> (i32, i32) {
    %c0_i32 = arith.constant 0 : i32
    %c0_i32_0 = arith.constant 0 : i32
    %c0_i32_1 = arith.constant 0 : i32
    return %c0_i32, %c0_i32_0 : i32, i32
  }
  func.func @transform_3(%arg0: i32) -> (i32, i32) {
    %c0_i32 = arith.constant 0 : i32
    %c0_i32_0 = arith.constant 0 : i32
    %c0_i32_1 = arith.constant 0 : i32
    return %c0_i32, %c0_i32_0 : i32, i32
  }
  func.func @transform_4(%arg0: i32) -> (i32, i32) {
    %c0_i32 = arith.constant 0 : i32
    %c0_i32_0 = arith.constant 0 : i32
    %c0_i32_1 = arith.constant 0 : i32
    return %c0_i32, %c0_i32_0 : i32, i32
  }
  func.func @transform_5(%arg0: i32) -> (i32, i32, i32) {
    %c0_i32 = arith.constant 0 : i32
    %c0_i32_0 = arith.constant 0 : i32
    %c0_i32_1 = arith.constant 0 : i32
    return %arg0, %c0_i32, %c0_i32_0 : i32, i32, i32
  }
  func.func @transform_6(%arg0: i32) -> (i32, i32, i32) {
    %c0_i32 = arith.constant 0 : i32
    %c0_i32_0 = arith.constant 0 : i32
    %c0_i32_1 = arith.constant 0 : i32
    return %arg0, %c0_i32, %c0_i32_0 : i32, i32, i32
  }
  func.func @transform_7(%arg0: i32) -> (i32, i32, i32) {
    %c0_i32 = arith.constant 0 : i32
    %c0_i32_0 = arith.constant 0 : i32
    %c0_i32_1 = arith.constant 0 : i32
    return %arg0, %c0_i32, %c0_i32_0 : i32, i32, i32
  }
  func.func @transform_8(%arg0: i32) -> (i32, i32, i32, i32) {
    %c0_i32 = arith.constant 0 : i32
    %c0_i32_0 = arith.constant 0 : i32
    %c0_i32_1 = arith.constant 0 : i32
    %c0_i32_2 = arith.constant 0 : i32
    return %arg0, %c0_i32, %c0_i32_0, %c0_i32_1 : i32, i32, i32, i32
  }
}

</mosaic_0001>

<llo_original>
// kernel: tpu_custom_call.1
$region0: #{tpu_custom_call.1}
  #allocation0 [shape = 'u32[]', space=smem, size = 0x4, offset = 0x4, fixed_abs, tag = 'smem constant byte address 0x4 - core index']
  #allocation1 [shape = 'u32[144,128]{1,0:T(1,128)}', space=vmem, size = 0x12000, scoped, tag = 'internal scratch']
  %s0 = inlined_call_operand.hbm [shape: f32[2,8,32], index: 0, kind: input, shape index: {}]
  %s1 = inlined_call_operand.hbm [shape: f32[32,100], index: 1, kind: input, shape index: {}]
  %s2 = inlined_call_operand.vmem [shape: f32[1,100], index: 2, kind: input, shape index: {}]
  %s3 = inlined_call_operand.hbm [shape: f32[33,99], index: 3, kind: input, shape index: {}]
  %s4 = inlined_call_operand.hbm [shape: f32[17,102], index: 4, kind: input, shape index: {}]
  %s5 = inlined_call_operand.hbm [shape: f32[2,8,8], index: 5, kind: output, shape index: {0}]
  %s6 = inlined_call_operand.hbm [shape: f32[2,8,8], index: 6, kind: output, shape index: {1}]
  %s7 = inlined_call_operand.hbm [shape: f32[2,8,8], index: 7, kind: output, shape index: {2}]
  %s8 = inlined_call_operand.hbm [shape: f32[2,6,8,8], index: 8, kind: output, shape index: {3}]
  %9 = xla_tuple %s5, %s6, %s7, %s8
  %s10 = sld [smem:[#allocation0]]
  $region93: #{tpu_custom_call.1} parent=0
    _
  %s12 = ssub.s32 1, %s10
  %s13 = scalar_select 0, %s12, %s10
  $region1: #{tpu_custom_call.1} parent=0
    #allocation2 [shape = 'u8[8192]{0}', space=vmem, size = 0x2000, scoped, tag = 'input window, operand 0']
    #allocation3 [shape = 's32[2]{0}', space=sflag, size = 0x8, scoped, tag = 'scoped memory for tpu_custom_call.1']
    #allocation4 [shape = 's32[2]{0}', space=sflag, size = 0x8, scoped, tag = 'scoped memory for tpu_custom_call.1']
    #allocation5 [shape = 'u8[16384]{0}', space=vmem, size = 0x4000, scoped, tag = 'input window, operand 1, single buffered']
    #allocation6 [shape = 's32[1]{0}', space=sflag, size = 0x4, scoped, tag = 'scoped memory for tpu_custom_call.1']
    #allocation7 [shape = 'u8[20480]{0}', space=vmem, size = 0x5000, scoped, tag = 'input window, operand 3, single buffered']
    #allocation8 [shape = 'u8[12288]{0}', space=vmem, size = 0x3000, scoped, tag = 'input window, operand 4, single buffered']
    #allocation9 [shape = 's32[1]{0}', space=sflag, size = 0x4, scoped, tag = 'scoped memory for tpu_custom_call.1']
    #allocation10 [shape = 'u8[8192]{0}', space=vmem, size = 0x2000, scoped, tag = 'output window, operand 0']
    #allocation11 [shape = 'u8[8192]{0}', space=vmem, size = 0x2000, scoped, tag = 'output window, operand 1']
    #allocation12 [shape = 's32[2]{0}', space=sflag, size = 0x8, scoped, tag = 'scoped memory for tpu_custom_call.1']
    #allocation13 [shape = 'u8[8192]{0}', space=vmem, size = 0x2000, scoped, tag = 'output window, operand 2']
    #allocation14 [shape = 'u8[49152]{0}', space=vmem, size = 0xc000, scoped, tag = 'output window, operand 3']
    #allocation15 [shape = 's32[2]{0}', space=sflag, size = 0x8, scoped, tag = 'scoped memory for tpu_custom_call.1']
    %14 = vsyncpa [#allocation3], 0
    %s15 = scalar_lea.sflag [#allocation3], 1
    %16 = vsyncpa %s15, 0
    %17 = vsyncpa [#allocation6], 0
    %18 = vsyncpa [#allocation9], 0
    %19 = vsyncpa [#allocation4], 0
    %s20 = scalar_lea.sflag [#allocation4], 1
    %21 = vsyncpa %s20, 0
    %22 = vsyncpa [#allocation12], 0
    %s23 = scalar_lea.sflag [#allocation12], 1
    %24 = vsyncpa %s23, 0
    %25 = vsyncpa [#allocation15], 0
    %s26 = scalar_lea.sflag [#allocation15], 1
    %27 = vsyncpa %s26, 0
    loop: start=0, step=1, limit=4
    $region2: #{tpu_custom_call.1} parent=1 // loop_pre_header
      _
    $region3: #{tpu_custom_call.1} parent=1 // loop_header
      %s29 = sphi 0, %s33
      %p30 = scmp.ge.s32.totalorder %s29, 4
      %s39 = sphi 0, %s41
      %s42 = sphi 0, %s39
      %s43 = sphi 0, %s42
      %s59 = sphi 0, %s43
      %s63 = sphi 0, %s63
      %s65 = sphi 0, %s63
      %s66 = sphi 0, %s65
      %s80 = sphi 0, %s66
      %s84 = sphi 0, %s84
      %s86 = sphi 0, %s84
      %s87 = sphi 0, %s86
      %s101 = sphi 0, %s87
      %s105 = sphi 0, %s105
      %s107 = sphi 0, %s105
      %s108 = sphi 0, %s107
      %s122 = sphi 0, %s108
      %s126 = sphi 0, %s126
      %s128 = sphi 0, %s126
      %s129 = sphi 0, %s128
      %s143 = sphi 0, %s129
      %s149 = sphi 0, %s151
      %s152 = sphi 0, %s149
      %s153 = sphi 0, %s152
      %s169 = sphi 0, %s153
      %s175 = sphi 0, %s177
      %s178 = sphi 0, %s175
      %s179 = sphi 0, %s178
      %s195 = sphi 0, %s179
      %s201 = sphi 0, %s203
      %s204 = sphi 0, %s201
      %s205 = sphi 0, %s204
      %s221 = sphi 0, %s205
      %s227 = sphi 0, %s229
      %s230 = sphi 0, %s227
      %s231 = sphi 0, %s230
      %s247 = sphi 0, %s231
    $region4: #{tpu_custom_call.1} parent=1 // loop_header_branch
      %32 = sbr.rel (%p30) target = $region8
    $region5: #{tpu_custom_call.1} parent=1 // loop_body
      %s34 = ssub.s32 %s29, 1
      %s35 = ssub.s32 %s29, 2
      %s36 = sadd.s32 %s29, 1
      %s37 = ssub.s32 %s29, %s36
      %p38 = scmp.eq.s32.totalorder %s37, 0
      %s40 = sadd.s32 %s39, 1
      %s41 = scalar_select %p38, %s39, %s40
      %p44 = pneg %p38
      %p45 = scmp.eq.s32.totalorder %s29, 1
      %p46 = por %p44, %p45
      %p47 = scmp.ne.s32.totalorder %s39, %s42
      %p48 = scmp.eq.s32.totalorder %s29, 0
      %p49 = por %p47, %p48
      %p50 = scmp.ne.s32.totalorder %s39, %s42
      %p51 = scmp.eq.s32.totalorder %s34, 1
      %p52 = por %p50, %p51
      %p53 = scmp.ne.s32.totalorder %s42, %s43
      %p54 = scmp.eq.s32.totalorder %s34, 0
      %p55 = por %p53, %p54
      %p56 = scmp.ne.s32.totalorder %s42, %s43
      %p57 = scmp.eq.s32.totalorder %s35, 1
      %p58 = por %p56, %p57
      %p60 = scmp.ne.s32.totalorder %s43, %s59
      %p61 = scmp.eq.s32.totalorder %s35, 0
      %p62 = por %p60, %p61
      %s64 = sadd.s32 %s63, 1
      %p67 = scmp.eq.s32.totalorder %s29, 1
      %p68 = scmp.ne.s32.totalorder %s63, %s65
      %p69 = scmp.eq.s32.totalorder %s29, 0
      %p70 = por %p68, %p69
      %p71 = scmp.ne.s32.totalorder %s63, %s65
      %p72 = scmp.eq.s32.totalorder %s34, 1
      %p73 = por %p71, %p72
      %p74 = scmp.ne.s32.totalorder %s65, %s66
      %p75 = scmp.eq.s32.totalorder %s34, 0
      %p76 = por %p74, %p75
      %p77 = scmp.ne.s32.totalorder %s65, %s66
      %p78 = scmp.eq.s32.totalorder %s35, 1
      %p79 = por %p77, %p78
      %p81 = scmp.ne.s32.totalorder %s66, %s80
      %p82 = scmp.eq.s32.totalorder %s35, 0
      %p83 = por %p81, %p82
      %s85 = sadd.s32 %s84, 1
      %p88 = scmp.eq.s32.totalorder %s29, 1
      %p89 = scmp.ne.s32.totalorder %s84, %s86
      %p90 = scmp.eq.s32.totalorder %s29, 0
      %p91 = por %p89, %p90
      %p92 = scmp.ne.s32.totalorder %s84, %s86
      %p93 = scmp.eq.s32.totalorder %s34, 1
      %p94 = por %p92, %p93
      %p95 = scmp.ne.s32.totalorder %s86, %s87
      %p96 = scmp.eq.s32.totalorder %s34, 0
      %p97 = por %p95, %p96
      %p98 = scmp.ne.s32.totalorder %s86, %s87
      %p99 = scmp.eq.s32.totalorder %s35, 1
      %p100 = por %p98, %p99
      %p102 = scmp.ne.s32.totalorder %s87, %s101
      %p103 = scmp.eq.s32.totalorder %s35, 0
      %p104 = por %p102, %p103
      %s106 = sadd.s32 %s105, 1
      %p109 = scmp.eq.s32.totalorder %s29, 1
      %p110 = scmp.ne.s32.totalorder %s105, %s107
      %p111 = scmp.eq.s32.totalorder %s29, 0
      %p112 = por %p110, %p111
      %p113 = scmp.ne.s32.totalorder %s105, %s107
      %p114 = scmp.eq.s32.totalorder %s34, 1
      %p115 = por %p113, %p114
      %p116 = scmp.ne.s32.totalorder %s107, %s108
      %p117 = scmp.eq.s32.totalorder %s34, 0
      %p118 = por %p116, %p117
      %p119 = scmp.ne.s32.totalorder %s107, %s108
      %p120 = scmp.eq.s32.totalorder %s35, 1
      %p121 = por %p119, %p120
      %p123 = scmp.ne.s32.totalorder %s108, %s122
      %p124 = scmp.eq.s32.totalorder %s35, 0
      %p125 = por %p123, %p124
      %s127 = sadd.s32 %s126, 1
      %p130 = scmp.eq.s32.totalorder %s29, 1
      %p131 = scmp.ne.s32.totalorder %s126, %s128
      %p132 = scmp.eq.s32.totalorder %s29, 0
      %p133 = por %p131, %p132
      %p134 = scmp.ne.s32.totalorder %s126, %s128
      %p135 = scmp.eq.s32.totalorder %s34, 1
      %p136 = por %p134, %p135
      %p137 = scmp.ne.s32.totalorder %s128, %s129
      %p138 = scmp.eq.s32.totalorder %s34, 0
      %p139 = por %p137, %p138
      %p140 = scmp.ne.s32.totalorder %s128, %s129
      %p141 = scmp.eq.s32.totalorder %s35, 1
      %p142 = por %p140, %p141
      %p144 = scmp.ne.s32.totalorder %s129, %s143
      %p145 = scmp.eq.s32.totalorder %s35, 0
      %p146 = por %p144, %p145
      %s147 = ssub.s32 %s29, %s36
      %p148 = scmp.eq.s32.totalorder %s147, 0
      %s150 = sadd.s32 %s149, 1
      %s151 = scalar_select %p148, %s149, %s150
      %p154 = pneg %p148
      %p155 = scmp.eq.s32.totalorder %s29, 1
      %p156 = por %p154, %p155
      %p157 = scmp.ne.s32.totalorder %s149, %s152
      %p158 = scmp.eq.s32.totalorder %s29, 0
      %p159 = por %p157, %p158
      %p160 = scmp.ne.s32.totalorder %s149, %s152
      %p161 = scmp.eq.s32.totalorder %s34, 1
      %p162 = por %p160, %p161
      %p163 = scmp.ne.s32.totalorder %s152, %s153
      %p164 = scmp.eq.s32.totalorder %s34, 0
      %p165 = por %p163, %p164
      %p166 = scmp.ne.s32.totalorder %s152, %s153
      %p167 = scmp.eq.s32.totalorder %s35, 1
      %p168 = por %p166, %p167
      %p170 = scmp.ne.s32.totalorder %s153, %s169
      %p171 = scmp.eq.s32.totalorder %s35, 0
      %p172 = por %p170, %p171
      %s173 = ssub.s32 %s29, %s36
      %p174 = scmp.eq.s32.totalorder %s173, 0
      %s176 = sadd.s32 %s175, 1
      %s177 = scalar_select %p174, %s175, %s176
      %p180 = pneg %p174
      %p181 = scmp.eq.s32.totalorder %s29, 1
      %p182 = por %p180, %p181
      %p183 = scmp.ne.s32.totalorder %s175, %s178
      %p184 = scmp.eq.s32.totalorder %s29, 0
      %p185 = por %p183, %p184
      %p186 = scmp.ne.s32.totalorder %s175, %s178
      %p187 = scmp.eq.s32.totalorder %s34, 1
      %p188 = por %p186, %p187
      %p189 = scmp.ne.s32.totalorder %s178, %s179
      %p190 = scmp.eq.s32.totalorder %s34, 0
      %p191 = por %p189, %p190
      %p192 = scmp.ne.s32.totalorder %s178, %s179
      %p193 = scmp.eq.s32.totalorder %s35, 1
      %p194 = por %p192, %p193
      %p196 = scmp.ne.s32.totalorder %s179, %s195
      %p197 = scmp.eq.s32.totalorder %s35, 0
      %p198 = por %p196, %p197
      %s199 = ssub.s32 %s29, %s36
      %p200 = scmp.eq.s32.totalorder %s199, 0
      %s202 = sadd.s32 %s201, 1
      %s203 = scalar_select %p200, %s201, %s202
      %p206 = pneg %p200
      %p207 = scmp.eq.s32.totalorder %s29, 1
      %p208 = por %p206, %p207
      %p209 = scmp.ne.s32.totalorder %s201, %s204
      %p210 = scmp.eq.s32.totalorder %s29, 0
      %p211 = por %p209, %p210
      %p212 = scmp.ne.s32.totalorder %s201, %s204
      %p213 = scmp.eq.s32.totalorder %s34, 1
      %p214 = por %p212, %p213
      %p215 = scmp.ne.s32.totalorder %s204, %s205
      %p216 = scmp.eq.s32.totalorder %s34, 0
      %p217 = por %p215, %p216
      %p218 = scmp.ne.s32.totalorder %s204, %s205
      %p219 = scmp.eq.s32.totalorder %s35, 1
      %p220 = por %p218, %p219
      %p222 = scmp.ne.s32.totalorder %s205, %s221
      %p223 = scmp.eq.s32.totalorder %s35, 0
      %p224 = por %p222, %p223
      %s225 = ssub.s32 %s29, %s36
      %p226 = scmp.eq.s32.totalorder %s225, 0
      %s228 = sadd.s32 %s227, 1
      %s229 = scalar_select %p226, %s227, %s228
      %p232 = pneg %p226
      %p233 = scmp.eq.s32.totalorder %s29, 1
      %p234 = por %p232, %p233
      %p235 = scmp.ne.s32.totalorder %s227, %s230
      %p236 = scmp.eq.s32.totalorder %s29, 0
      %p237 = por %p235, %p236
      %p238 = scmp.ne.s32.totalorder %s227, %s230
      %p239 = scmp.eq.s32.totalorder %s34, 1
      %p240 = por %p238, %p239
      %p241 = scmp.ne.s32.totalorder %s230, %s231
      %p242 = scmp.eq.s32.totalorder %s34, 0
      %p243 = por %p241, %p242
      %p244 = scmp.ne.s32.totalorder %s230, %s231
      %p245 = scmp.eq.s32.totalorder %s35, 1
      %p246 = por %p244, %p245
      %p248 = scmp.ne.s32.totalorder %s231, %s247
      %p249 = scmp.eq.s32.totalorder %s35, 0
      %p250 = por %p248, %p249
      %p251 = scmp.le.s32.totalorder 1, %s29
      %p252 = scmp.lt.s32.totalorder %s29, 3
      %p253 = pnand %p251, %p252
      %p254 = pneg %p253
      // Predicated region
      $region9: #{tpu_custom_call.1} parent=5 // pred_check
        _
      $region10: #{tpu_custom_call.1} parent=5 // pred_check_branch
        %256 = sbr.rel (%p253) target = $region12
      $region11: #{tpu_custom_call.1} parent=5 // pred_region
        %s257 = ssub.s32 %s29, 1
        // Predicated region
        $region13: #{tpu_custom_call.1} parent=11 // pred_check
          %p258 = pneg %p76
        $region14: #{tpu_custom_call.1} parent=11 // pred_check_branch
          %260 = sbr.rel (%p258) target = $region16
        $region15: #{tpu_custom_call.1} parent=11 // pred_region
          %s262 = ssub.s32 512, 512
          %263 = vsyncadd [#allocation6], %s262
          %s264 = sshll.u32 [#allocation5], 4
          %s265 = int_to_ptr.vmem [resolvable:$true] %s264
          %270 = dma.hbm_to_vmem [thread:$0]  %s1, 512, %s265, [#allocation6], 128, 128, 8
        $region16: #{tpu_custom_call.1} parent=11 // pred_fallthru
          _
        // Predicated region
        $region17: #{tpu_custom_call.1} parent=11 // pred_check
          %p271 = pneg %p97
        $region18: #{tpu_custom_call.1} parent=11 // pred_check_branch
          %273 = sbr.rel (%p271) target = $region20
        $region19: #{tpu_custom_call.1} parent=11 // pred_region
          _
        $region20: #{tpu_custom_call.1} parent=11 // pred_fallthru
          _
        // Predicated region
        $region21: #{tpu_custom_call.1} parent=11 // pred_check
          %p274 = pneg %p118
        $region22: #{tpu_custom_call.1} parent=11 // pred_check_branch
          %276 = sbr.rel (%p274) target = $region24
        $region23: #{tpu_custom_call.1} parent=11 // pred_region
          %s278 = ssub.s32 640, 640
          %279 = vsyncadd [#allocation6], %s278
          %s280 = sshll.u32 [#allocation7], 4
          %s281 = int_to_ptr.vmem [resolvable:$true] %s280
          %286 = dma.hbm_to_vmem [thread:$0]  %s3, 640, %s281, [#allocation6], 128, 128, 8
        $region24: #{tpu_custom_call.1} parent=11 // pred_fallthru
          _
        // Predicated region
        $region25: #{tpu_custom_call.1} parent=11 // pred_check
          %p287 = pneg %p139
        $region26: #{tpu_custom_call.1} parent=11 // pred_check_branch
          %289 = sbr.rel (%p287) target = $region28
        $region27: #{tpu_custom_call.1} parent=11 // pred_region
          %s291 = ssub.s32 384, 384
          %292 = vsyncadd [#allocation9], %s291
          %s293 = sshll.u32 [#allocation8], 4
          %s294 = int_to_ptr.vmem [resolvable:$true] %s293
          %299 = dma.hbm_to_vmem [thread:$0]  %s4, 384, %s294, [#allocation9], 128, 128, 8
        $region28: #{tpu_custom_call.1} parent=11 // pred_fallthru
          _
      $region12: #{tpu_custom_call.1} parent=5 // pred_fallthru
        _
      %p300 = scmp.lt.s32.totalorder %s29, 2
      // Predicated region
      $region29: #{tpu_custom_call.1} parent=5 // pred_check
        %p301 = pneg %p300
      $region30: #{tpu_custom_call.1} parent=5 // pred_check_branch
        %303 = sbr.rel (%p301) target = $region32
      $region31: #{tpu_custom_call.1} parent=5 // pred_region
        // Predicated region
        $region33: #{tpu_custom_call.1} parent=31 // pred_check
          %p304 = pneg %p49
        $region34: #{tpu_custom_call.1} parent=31 // pred_check_branch
          %306 = sbr.rel (%p304) target = $region36
        $region35: #{tpu_custom_call.1} parent=31 // pred_region
          %s307 = sand.u32 %s39, 1
          %s308 = scalar_lea.sflag [#allocation3], %s307
          %s309 = sand.u32 %s39, 1
          %s310 = smul.addr %s309, 8
          %s311 = scalar_lea.vmem [#allocation2], %s310
          %s313 = ssub.s32 128, 128
          %314 = vsyncadd %s308, %s313
          %s315 = smul.addr %s29, 128
          %s316 = scalar_lea.hbm %s0, %s315
          %s318 = sshll.u32 %s311, 4
          %s319 = int_to_ptr.vmem [resolvable:$true] %s318
          %321 = dma.hbm_to_vmem [thread:$0]  %s316, 128, %s319, %s308
        $region36: #{tpu_custom_call.1} parent=31 // pred_fallthru
          _
      $region32: #{tpu_custom_call.1} parent=5 // pred_fallthru
        _
      %p322 = scmp.le.s32.totalorder 1, %s29
      %p323 = scmp.lt.s32.totalorder %s29, 3
      %p324 = pnand %p322, %p323
      %p325 = pneg %p324
      // Predicated region
      $region37: #{tpu_custom_call.1} parent=5 // pred_check
        _
      $region38: #{tpu_custom_call.1} parent=5 // pred_check_branch
        %327 = sbr.rel (%p324) target = $region40
      $region39: #{tpu_custom_call.1} parent=5 // pred_region
        %s328 = ssub.s32 %s29, 1
        %s329 = sand.u32 %s42, 1
        %s330 = scalar_lea.sflag [#allocation3], %s329
        %s331 = sand.u32 %s42, 1
        %s332 = smul.addr %s331, 8
        %s333 = scalar_lea.vmem [#allocation2], %s332
        // Predicated region
        $region41: #{tpu_custom_call.1} parent=39 // pred_check
          %p334 = pneg %p55
        $region42: #{tpu_custom_call.1} parent=39 // pred_check_branch
          %336 = sbr.rel (%p334) target = $region44
        $region43: #{tpu_custom_call.1} parent=39 // pred_region
          %337 = dma.done %s330, 128
        $region44: #{tpu_custom_call.1} parent=39 // pred_fallthru
          _
        // Predicated region
        $region45: #{tpu_custom_call.1} parent=39 // pred_check
          %p338 = pneg %p76
        $region46: #{tpu_custom_call.1} parent=39 // pred_check_branch
          %340 = sbr.rel (%p338) target = $region48
        $region47: #{tpu_custom_call.1} parent=39 // pred_region
          %341 = dma.done [#allocation6], 512
        $region48: #{tpu_custom_call.1} parent=39 // pred_fallthru
          _
        // Predicated region
        $region49: #{tpu_custom_call.1} parent=39 // pred_check
          %p342 = pneg %p118
        $region50: #{tpu_custom_call.1} parent=39 // pred_check_branch
          %344 = sbr.rel (%p342) target = $region52
        $region51: #{tpu_custom_call.1} parent=39 // pred_region
          %345 = dma.done [#allocation6], 640
        $region52: #{tpu_custom_call.1} parent=39 // pred_fallthru
          _
        // Predicated region
        $region53: #{tpu_custom_call.1} parent=39 // pred_check
          %p346 = pneg %p139
        $region54: #{tpu_custom_call.1} parent=39 // pred_check_branch
          %348 = sbr.rel (%p346) target = $region56
        $region55: #{tpu_custom_call.1} parent=39 // pred_region
          %349 = dma.done [#allocation9], 384
        $region56: #{tpu_custom_call.1} parent=39 // pred_fallthru
          _
        %s350 = sand.u32 %s42, 1
        %s351 = scalar_lea.sflag [#allocation3], %s350
        %s352 = sand.u32 %s42, 1
        %s353 = smul.addr %s352, 8
        %s354 = scalar_lea.vmem [#allocation2], %s353
        %p355 = pneg %p55
        %p356 = pneg %p52
        %p357 = pneg %p76
        %p358 = pneg %p73
        %p359 = pneg %p97
        %p360 = pneg %p94
        %p361 = pneg %p118
        %p362 = pneg %p115
        %p363 = pneg %p139
        %p364 = pneg %p136
        %p365 = pneg %p165
        %p366 = pneg %p162
        %s367 = sand.u32 %s152, 1
        %s368 = scalar_lea.sflag [#allocation4], %s367
        %s369 = sand.u32 %s152, 1
        %s370 = smul.addr %s369, 8
        %s371 = scalar_lea.vmem [#allocation10], %s370
        %p372 = pneg %p191
        %p373 = pneg %p188
        %s374 = sand.u32 %s34, 1
        %s375 = scalar_lea.sflag [#allocation12], %s374
        %s376 = sand.u32 %s178, 1
        %s377 = smul.addr %s376, 8
        %s378 = scalar_lea.vmem [#allocation11], %s377
        %p379 = pneg %p217
        %p380 = pneg %p214
        %s381 = sand.u32 %s34, 1
        %s382 = scalar_lea.sflag [#allocation12], %s381
        %s383 = sand.u32 %s204, 1
        %s384 = smul.addr %s383, 8
        %s385 = scalar_lea.vmem [#allocation13], %s384
        %p386 = pneg %p243
        %p387 = pneg %p240
        %s388 = sand.u32 %s230, 1
        %s389 = scalar_lea.sflag [#allocation15], %s388
        %s390 = sand.u32 %s230, 1
        %s391 = smul.addr %s390, 48
        %s392 = scalar_lea.vmem [#allocation14], %s391
        %v393 = vld [vmem:[%s333] sm:$0xff]
        %v394 = vld [vmem:[#allocation5] sm:$0xff]
        %v395 = vld [vmem:[#allocation5 + $0x8] sm:$0xff]
        %v396 = vld [vmem:[#allocation5 + $0x10] sm:$0xff]
        %v397 = vld [vmem:[#allocation5 + $0x18] sm:$0xff]
        %v398 = vld [vmem:[%s2] sm:$0x1]
        %v400 = vlaneseq
        %v401 = vshrl.u32 %v400, 7
        %v402 = vsub.s32 0, %v401
        %v403 = vrot.slane %v398, %v402
        %vm405 = vcmask 261120
        %v407 = vsel %vm405, %v393, 0
        %409 = vmatprep.subr.mxu0 0.0
        %410 = vmatpush1.msra.mxu0 %v394
        %411 = vmatprep.subr.mxu0 0.0
        %412 = vmatpush1.msra.mxu0 %v395
        %413 = vmatprep.subr.mxu0 0.0
        %414 = vmatpush1.msra.mxu0 %v396
        %415 = vmatprep.subr.mxu0 0.0
        %416 = vmatpush1.msra.mxu0 %v397
        %417 = vmatprep.subr.mxu0 0.0
        %418 = vmatpush1.msra.mxu0 0.0
        %419 = vmatprep.subr.mxu0 0.0
        %420 = vmatpush1.msra.mxu0 0.0
        %421 = vmatprep.subr.mxu0 0.0
        %422 = vmatpush1.msra.mxu0 0.0
        %423 = vmatprep.subr.mxu0 0.0
        %424 = vmatpush1.msra.mxu0 0.0
        %425 = vmatprep.subr.mxu0 0.0
        %426 = vmatpush1.msra.mxu0 0.0
        %427 = vmatprep.subr.mxu0 0.0
        %428 = vmatpush1.msra.mxu0 0.0
        %429 = vmatprep.subr.mxu0 0.0
        %430 = vmatpush1.msra.mxu0 0.0
        %431 = vmatprep.subr.mxu0 0.0
        %432 = vmatpush1.msra.mxu0 0.0
        %433 = vmatprep.subr.mxu0 0.0
        %434 = vmatpush1.msra.mxu0 0.0
        %435 = vmatprep.subr.mxu0 0.0
        %436 = vmatpush1.msra.mxu0 0.0
        %437 = vmatprep.subr.mxu0 0.0
        %438 = vmatpush1.msra.mxu0 0.0
        %439 = vmatprep.subr.mxu0 0.0
        %440 = vmatpush1.msra.mxu0 0.0
        %441 = vmatprep.subr.mxu0 0.0
        %442 = vmatpush1.msra.mxu0 0.0
        %443 = vmatprep.subr.mxu0 0.0
        %444 = vmatpush1.msra.mxu0 0.0
        %445 = vmatprep.subr.mxu0 0.0
        %446 = vmatpush1.msra.mxu0 0.0
        %447 = vmatprep.subr.mxu0 0.0
        %448 = vmatpush1.msra.mxu0 0.0
        %449 = vmatprep.subr.mxu0 0.0
        %450 = vmatpush1.msra.mxu0 0.0
        %451 = vmatprep.subr.mxu0 0.0
        %452 = vmatpush1.msra.mxu0 0.0
        %453 = vmatprep.subr.mxu0 0.0
        %454 = vmatpush1.msra.mxu0 0.0
        %455 = vmatprep.subr.mxu0 0.0
        %456 = vmatpush1.msra.mxu0 0.0
        %457 = vmatprep.subr.mxu0 0.0
        %458 = vmatpush1.msra.mxu0 0.0
        %459 = vmatprep.subr.mxu0 0.0
        %460 = vmatpush1.msra.mxu0 0.0
        %461 = vmatprep.subr.mxu0 0.0
        %462 = vmatpush1.msra.mxu0 0.0
        %463 = vmatprep.subr.mxu0 0.0
        %464 = vmatpush1.msra.mxu0 0.0
        %465 = vmatprep.subr.mxu0 0.0
        %466 = vmatpush1.msra.mxu0 0.0
        %467 = vmatprep.subr.mxu0 0.0
        %468 = vmatpush1.msra.mxu0 0.0
        %469 = vmatprep.subr.mxu0 0.0
        %470 = vmatpush1.msra.mxu0 0.0
        %471 = vmatprep.subr.mxu0 0.0
        %472 = vmatpush1.msra.mxu0 0.0
        %473 = vmatprep.mubr.f32.mxu0 0.0
        %474 = vmatmul.mubr.f32.gmra.mrb[0].mxu0 %v407
        %v475 = vpop.f32.mrb[0].mxu0
        %v476 = vadd.f32 %v403, %v475
        %v477 = vpop.f32.mrb[0].mxu0
        %478 = vdwg.mxu0
        %vm479 = vcmp.gt.f32.partialorder %v476, 0.0
        %v480 = vmul.f32 %v476, 0.1
        %v481 = vsel %vm479, %v476, %v480
        %v482 = vld [vmem:[#allocation7] sm:$0xff]
        %v483 = vld [vmem:[#allocation7 + $0x8] sm:$0xff]
        %v484 = vld [vmem:[#allocation7 + $0x10] sm:$0xff]
        %v485 = vld [vmem:[#allocation7 + $0x18] sm:$0xff]
        %v486 = vld [vmem:[#allocation7 + $0x20] sm:$0x1]
        %vm487 = vcmask 269312
        %v489 = vsel %vm487, %v481, 0
        %vm491 = vcmask 1040384
        %v493 = vsel %vm491, %v486, 0
        %495 = vmatprep.subr.mxu0 0.0
        %496 = vmatpush1.msra.mxu0 %v482
        %497 = vmatprep.subr.mxu0 0.0
        %498 = vmatpush1.msra.mxu0 %v483
        %499 = vmatprep.subr.mxu0 0.0
        %500 = vmatpush1.msra.mxu0 %v484
        %501 = vmatprep.subr.mxu0 0.0
        %502 = vmatpush1.msra.mxu0 %v485
        %503 = vmatprep.subr.mxu0 0.0
        %504 = vmatpush1.msra.mxu0 %v493
        %505 = vmatprep.subr.mxu0 0.0
        %506 = vmatpush1.msra.mxu0 0.0
        %507 = vmatprep.subr.mxu0 0.0
        %508 = vmatpush1.msra.mxu0 0.0
        %509 = vmatprep.subr.mxu0 0.0
        %510 = vmatpush1.msra.mxu0 0.0
        %511 = vmatprep.subr.mxu0 0.0
        %512 = vmatpush1.msra.mxu0 0.0
        %513 = vmatprep.subr.mxu0 0.0
        %514 = vmatpush1.msra.mxu0 0.0
        %515 = vmatprep.subr.mxu0 0.0
        %516 = vmatpush1.msra.mxu0 0.0
        %517 = vmatprep.subr.mxu0 0.0
        %518 = vmatpush1.msra.mxu0 0.0
        %519 = vmatprep.subr.mxu0 0.0
        %520 = vmatpush1.msra.mxu0 0.0
        %521 = vmatprep.subr.mxu0 0.0
        %522 = vmatpush1.msra.mxu0 0.0
        %523 = vmatprep.subr.mxu0 0.0
        %524 = vmatpush1.msra.mxu0 0.0
        %525 = vmatprep.subr.mxu0 0.0
        %526 = vmatpush1.msra.mxu0 0.0
        %527 = vmatprep.subr.mxu0 0.0
        %528 = vmatpush1.msra.mxu0 0.0
        %529 = vmatprep.subr.mxu0 0.0
        %530 = vmatpush1.msra.mxu0 0.0
        %531 = vmatprep.subr.mxu0 0.0
        %532 = vmatpush1.msra.mxu0 0.0
        %533 = vmatprep.subr.mxu0 0.0
        %534 = vmatpush1.msra.mxu0 0.0
        %535 = vmatprep.subr.mxu0 0.0
        %536 = vmatpush1.msra.mxu0 0.0
        %537 = vmatprep.subr.mxu0 0.0
        %538 = vmatpush1.msra.mxu0 0.0
        %539 = vmatprep.subr.mxu0 0.0
        %540 = vmatpush1.msra.mxu0 0.0
        %541 = vmatprep.subr.mxu0 0.0
        %542 = vmatpush1.msra.mxu0 0.0
        %543 = vmatprep.subr.mxu0 0.0
        %544 = vmatpush1.msra.mxu0 0.0
        %545 = vmatprep.subr.mxu0 0.0
        %546 = vmatpush1.msra.mxu0 0.0
        %547 = vmatprep.subr.mxu0 0.0
        %548 = vmatpush1.msra.mxu0 0.0
        %549 = vmatprep.subr.mxu0 0.0
        %550 = vmatpush1.msra.mxu0 0.0
        %551 = vmatprep.subr.mxu0 0.0
        %552 = vmatpush1.msra.mxu0 0.0
        %553 = vmatprep.subr.mxu0 0.0
        %554 = vmatpush1.msra.mxu0 0.0
        %555 = vmatprep.subr.mxu0 0.0
        %556 = vmatpush1.msra.mxu0 0.0
        %557 = vmatprep.subr.mxu0 0.0
        %558 = vmatpush1.msra.mxu0 0.0
        %559 = vmatprep.mubr.f32.mxu0 0.0
        %560 = vmatmul.mubr.f32.gmra.mrb[0].mxu0 %v489
        %v561 = vpop.f32.mrb[0].mxu0
        %v562 = vadd.f32 0.0, %v561
        %v563 = vpop.f32.mrb[0].mxu0
        %564 = vdwg.mxu0
        %565 = vrot.lane.b32.xlu0 %v481, 95
        %v566 = vpop.permute.xlu0 %565
        %v568 = vsel %vm487, %v562, 0
        %v570 = vsel %vm487, %v566, 0
        %572 = vmatprep.subr.mxu0 0.0
        %573 = vmatpush1.xpose.msra.mxu0 %v570
        %574 = vmatprep.subr.mxu0 0.0
        %575 = vmatpush1.xpose.msra.mxu0 0.0
        %576 = vmatprep.subr.mxu0 0.0
        %577 = vmatpush1.xpose.msra.mxu0 0.0
        %578 = vmatprep.subr.mxu0 0.0
        %579 = vmatpush1.xpose.msra.mxu0 0.0
        %580 = vmatprep.subr.mxu0 0.0
        %581 = vmatpush1.xpose.msra.mxu0 0.0
        %582 = vmatprep.subr.mxu0 0.0
        %583 = vmatpush1.xpose.msra.mxu0 0.0
        %584 = vmatprep.subr.mxu0 0.0
        %585 = vmatpush1.xpose.msra.mxu0 0.0
        %586 = vmatprep.subr.mxu0 0.0
        %587 = vmatpush1.xpose.msra.mxu0 0.0
        %588 = vmatprep.subr.mxu0 0.0
        %589 = vmatpush1.xpose.msra.mxu0 0.0
        %590 = vmatprep.subr.mxu0 0.0
        %591 = vmatpush1.xpose.msra.mxu0 0.0
        %592 = vmatprep.subr.mxu0 0.0
        %593 = vmatpush1.xpose.msra.mxu0 0.0
        %594 = vmatprep.subr.mxu0 0.0
        %595 = vmatpush1.xpose.msra.mxu0 0.0
        %596 = vmatprep.subr.mxu0 0.0
        %597 = vmatpush1.xpose.msra.mxu0 0.0
        %598 = vmatprep.subr.mxu0 0.0
        %599 = vmatpush1.xpose.msra.mxu0 0.0
        %600 = vmatprep.subr.mxu0 0.0
        %601 = vmatpush1.xpose.msra.mxu0 0.0
        %602 = vmatprep.subr.mxu0 0.0
        %603 = vmatpush1.xpose.msra.mxu0 0.0
        %604 = vmatprep.subr.mxu0 0.0
        %605 = vmatpush1.xpose.msra.mxu0 0.0
        %606 = vmatprep.subr.mxu0 0.0
        %607 = vmatpush1.xpose.msra.mxu0 0.0
        %608 = vmatprep.subr.mxu0 0.0
        %609 = vmatpush1.xpose.msra.mxu0 0.0
        %610 = vmatprep.subr.mxu0 0.0
        %611 = vmatpush1.xpose.msra.mxu0 0.0
        %612 = vmatprep.subr.mxu0 0.0
        %613 = vmatpush1.xpose.msra.mxu0 0.0
        %614 = vmatprep.subr.mxu0 0.0
        %615 = vmatpush1.xpose.msra.mxu0 0.0
        %616 = vmatprep.subr.mxu0 0.0
        %617 = vmatpush1.xpose.msra.mxu0 0.0
        %618 = vmatprep.subr.mxu0 0.0
        %619 = vmatpush1.xpose.msra.mxu0 0.0
        %620 = vmatprep.subr.mxu0 0.0
        %621 = vmatpush1.xpose.msra.mxu0 0.0
        %622 = vmatprep.subr.mxu0 0.0
        %623 = vmatpush1.xpose.msra.mxu0 0.0
        %624 = vmatprep.subr.mxu0 0.0
        %625 = vmatpush1.xpose.msra.mxu0 0.0
        %626 = vmatprep.subr.mxu0 0.0
        %627 = vmatpush1.xpose.msra.mxu0 0.0
        %628 = vmatprep.subr.mxu0 0.0
        %629 = vmatpush1.xpose.msra.mxu0 0.0
        %630 = vmatprep.subr.mxu0 0.0
        %631 = vmatpush1.xpose.msra.mxu0 0.0
        %632 = vmatprep.subr.mxu0 0.0
        %633 = vmatpush1.xpose.msra.mxu0 0.0
        %634 = vmatprep.subr.mxu0 0.0
        %635 = vmatpush1.xpose.msra.mxu0 0.0
        %636 = vmatprep.mubr.f32.mxu0 0.0
        %637 = vmatmul.mubr.f32.gmra.mrb[0].mxu0 %v568
        %v638 = vpop.f32.mrb[0].mxu0
        %v639 = vadd.f32 0.0, %v638
        %v640 = vpop.f32.mrb[0].mxu0
        %641 = vdwg.mxu0
        %642 = vrot.lane.b32.xlu0 %v562, 95
        %v643 = vpop.permute.xlu0 %642
        %v644 = vsel %vm487, %v643, 0
        %646 = vmatprep.subr.mxu0 0.0
        %647 = vmatpush1.xpose.msra.mxu0 %v489
        %648 = vmatprep.subr.mxu0 0.0
        %649 = vmatpush1.xpose.msra.mxu0 0.0
        %650 = vmatprep.subr.mxu0 0.0
        %651 = vmatpush1.xpose.msra.mxu0 0.0
        %652 = vmatprep.subr.mxu0 0.0
        %653 = vmatpush1.xpose.msra.mxu0 0.0
        %654 = vmatprep.subr.mxu0 0.0
        %655 = vmatpush1.xpose.msra.mxu0 0.0
        %656 = vmatprep.subr.mxu0 0.0
        %657 = vmatpush1.xpose.msra.mxu0 0.0
        %658 = vmatprep.subr.mxu0 0.0
        %659 = vmatpush1.xpose.msra.mxu0 0.0
        %660 = vmatprep.subr.mxu0 0.0
        %661 = vmatpush1.xpose.msra.mxu0 0.0
        %662 = vmatprep.subr.mxu0 0.0
        %663 = vmatpush1.xpose.msra.mxu0 0.0
        %664 = vmatprep.subr.mxu0 0.0
        %665 = vmatpush1.xpose.msra.mxu0 0.0
        %666 = vmatprep.subr.mxu0 0.0
        %667 = vmatpush1.xpose.msra.mxu0 0.0
        %668 = vmatprep.subr.mxu0 0.0
        %669 = vmatpush1.xpose.msra.mxu0 0.0
        %670 = vmatprep.subr.mxu0 0.0
        %671 = vmatpush1.xpose.msra.mxu0 0.0
        %672 = vmatprep.subr.mxu0 0.0
        %673 = vmatpush1.xpose.msra.mxu0 0.0
        %674 = vmatprep.subr.mxu0 0.0
        %675 = vmatpush1.xpose.msra.mxu0 0.0
        %676 = vmatprep.subr.mxu0 0.0
        %677 = vmatpush1.xpose.msra.mxu0 0.0
        %678 = vmatprep.subr.mxu0 0.0
        %679 = vmatpush1.xpose.msra.mxu0 0.0
        %680 = vmatprep.subr.mxu0 0.0
        %681 = vmatpush1.xpose.msra.mxu0 0.0
        %682 = vmatprep.subr.mxu0 0.0
        %683 = vmatpush1.xpose.msra.mxu0 0.0
        %684 = vmatprep.subr.mxu0 0.0
        %685 = vmatpush1.xpose.msra.mxu0 0.0
        %686 = vmatprep.subr.mxu0 0.0
        %687 = vmatpush1.xpose.msra.mxu0 0.0
        %688 = vmatprep.subr.mxu0 0.0
        %689 = vmatpush1.xpose.msra.mxu0 0.0
        %690 = vmatprep.subr.mxu0 0.0
        %691 = vmatpush1.xpose.msra.mxu0 0.0
        %692 = vmatprep.subr.mxu0 0.0
        %693 = vmatpush1.xpose.msra.mxu0 0.0
        %694 = vmatprep.subr.mxu0 0.0
        %695 = vmatpush1.xpose.msra.mxu0 0.0
        %696 = vmatprep.subr.mxu0 0.0
        %697 = vmatpush1.xpose.msra.mxu0 0.0
        %698 = vmatprep.subr.mxu0 0.0
        %699 = vmatpush1.xpose.msra.mxu0 0.0
        %700 = vmatprep.subr.mxu0 0.0
        %701 = vmatpush1.xpose.msra.mxu0 0.0
        %702 = vmatprep.subr.mxu0 0.0
        %703 = vmatpush1.xpose.msra.mxu0 0.0
        %704 = vmatprep.subr.mxu0 0.0
        %705 = vmatpush1.xpose.msra.mxu0 0.0
        %706 = vmatprep.subr.mxu0 0.0
        %707 = vmatpush1.xpose.msra.mxu0 0.0
        %708 = vmatprep.subr.mxu0 0.0
        %709 = vmatpush1.xpose.msra.mxu0 0.0
        %710 = vmatprep.mubr.f32.mxu0 0.0
        %711 = vmatmul.mubr.f32.gmra.mrb[0].mxu0 %v644
        %v712 = vpop.f32.mrb[0].mxu0
        %v713 = vadd.f32 0.0, %v712
        %v714 = vpop.f32.mrb[0].mxu0
        %715 = vdwg.mxu0
        %716 = vrot.lane.b32.xlu0 %v562, 62
        %v717 = vpop.permute.xlu0 %716
        %v718 = vsel %vm487, %v717, 0
        %720 = vmatprep.subr.mxu0 0.0
        %721 = vmatpush1.xpose.msra.mxu0 %v570
        %722 = vmatprep.subr.mxu0 0.0
        %723 = vmatpush1.xpose.msra.mxu0 0.0
        %724 = vmatprep.subr.mxu0 0.0
        %725 = vmatpush1.xpose.msra.mxu0 0.0
        %726 = vmatprep.subr.mxu0 0.0
        %727 = vmatpush1.xpose.msra.mxu0 0.0
        %728 = vmatprep.subr.mxu0 0.0
        %729 = vmatpush1.xpose.msra.mxu0 0.0
        %730 = vmatprep.subr.mxu0 0.0
        %731 = vmatpush1.xpose.msra.mxu0 0.0
        %732 = vmatprep.subr.mxu0 0.0
        %733 = vmatpush1.xpose.msra.mxu0 0.0
        %734 = vmatprep.subr.mxu0 0.0
        %735 = vmatpush1.xpose.msra.mxu0 0.0
        %736 = vmatprep.subr.mxu0 0.0
        %737 = vmatpush1.xpose.msra.mxu0 0.0
        %738 = vmatprep.subr.mxu0 0.0
        %739 = vmatpush1.xpose.msra.mxu0 0.0
        %740 = vmatprep.subr.mxu0 0.0
        %741 = vmatpush1.xpose.msra.mxu0 0.0
        %742 = vmatprep.subr.mxu0 0.0
        %743 = vmatpush1.xpose.msra.mxu0 0.0
        %744 = vmatprep.subr.mxu0 0.0
        %745 = vmatpush1.xpose.msra.mxu0 0.0
        %746 = vmatprep.subr.mxu0 0.0
        %747 = vmatpush1.xpose.msra.mxu0 0.0
        %748 = vmatprep.subr.mxu0 0.0
        %749 = vmatpush1.xpose.msra.mxu0 0.0
        %750 = vmatprep.subr.mxu0 0.0
        %751 = vmatpush1.xpose.msra.mxu0 0.0
        %752 = vmatprep.subr.mxu0 0.0
        %753 = vmatpush1.xpose.msra.mxu0 0.0
        %754 = vmatprep.subr.mxu0 0.0
        %755 = vmatpush1.xpose.msra.mxu0 0.0
        %756 = vmatprep.subr.mxu0 0.0
        %757 = vmatpush1.xpose.msra.mxu0 0.0
        %758 = vmatprep.subr.mxu0 0.0
        %759 = vmatpush1.xpose.msra.mxu0 0.0
        %760 = vmatprep.subr.mxu0 0.0
        %761 = vmatpush1.xpose.msra.mxu0 0.0
        %762 = vmatprep.subr.mxu0 0.0
        %763 = vmatpush1.xpose.msra.mxu0 0.0
        %764 = vmatprep.subr.mxu0 0.0
        %765 = vmatpush1.xpose.msra.mxu0 0.0
        %766 = vmatprep.subr.mxu0 0.0
        %767 = vmatpush1.xpose.msra.mxu0 0.0
        %768 = vmatprep.subr.mxu0 0.0
        %769 = vmatpush1.xpose.msra.mxu0 0.0
        %770 = vmatprep.subr.mxu0 0.0
        %771 = vmatpush1.xpose.msra.mxu0 0.0
        %772 = vmatprep.subr.mxu0 0.0
        %773 = vmatpush1.xpose.msra.mxu0 0.0
        %774 = vmatprep.subr.mxu0 0.0
        %775 = vmatpush1.xpose.msra.mxu0 0.0
        %776 = vmatprep.subr.mxu0 0.0
        %777 = vmatpush1.xpose.msra.mxu0 0.0
        %778 = vmatprep.subr.mxu0 0.0
        %779 = vmatpush1.xpose.msra.mxu0 0.0
        %780 = vmatprep.subr.mxu0 0.0
        %781 = vmatpush1.xpose.msra.mxu0 0.0
        %782 = vmatprep.subr.mxu0 0.0
        %783 = vmatpush1.xpose.msra.mxu0 0.0
        %784 = vmatprep.mubr.f32.mxu0 0.0
        %785 = vmatmul.mubr.f32.gmra.mrb[0].mxu0 %v718
        %v786 = vpop.f32.mrb[0].mxu0
        %v787 = vadd.f32 0.0, %v786
        %v788 = vpop.f32.mrb[0].mxu0
        %789 = vdwg.mxu0
        %v790 = vlaneseq
        %v791 = vshrl.u32 %v790, 7
        %v792 = vlaneseq
        %v793 = vand.u32 %v792, 127
        %vm794 = vcmp.ge.s32.totalorder %v793, %v791
        %795 = vxpose.xlu0.b32.start [1/16] %v639, 128
        %796 = vxpose.xlu0.b32.cont [2/16] 0.0, 128
        %797 = vxpose.xlu0.b32.cont [3/16] 0.0, 128
        %798 = vxpose.xlu0.b32.cont [4/16] 0.0, 128
        %799 = vxpose.xlu0.b32.cont [5/16] 0.0, 128
        %800 = vxpose.xlu0.b32.cont [6/16] 0.0, 128
        %801 = vxpose.xlu0.b32.cont [7/16] 0.0, 128
        %802 = vxpose.xlu0.b32.cont [8/16] 0.0, 128
        %803 = vxpose.xlu0.b32.cont [9/16] 0.0, 128
        %804 = vxpose.xlu0.b32.cont [10/16] 0.0, 128
        %805 = vxpose.xlu0.b32.cont [11/16] 0.0, 128
        %806 = vxpose.xlu0.b32.cont [12/16] 0.0, 128
        %807 = vxpose.xlu0.b32.cont [13/16] 0.0, 128
        %808 = vxpose.xlu0.b32.cont [14/16] 0.0, 128
        %809 = vxpose.xlu0.b32.cont [15/16] 0.0, 128
        %810 = vxpose.xlu0.b32.end [16/16] 0.0, 128
        %v811 = vpop.trf.xlu0
        %v812 = vpop.trf.xlu0
        %v813 = vpop.trf.xlu0
        %v814 = vpop.trf.xlu0
        %v815 = vpop.trf.xlu0
        %v816 = vpop.trf.xlu0
        %v817 = vpop.trf.xlu0
        %v818 = vpop.trf.xlu0
        %v819 = vpop.trf.xlu0
        %v820 = vpop.trf.xlu0
        %v821 = vpop.trf.xlu0
        %v822 = vpop.trf.xlu0
        %v823 = vpop.trf.xlu0
        %v824 = vpop.trf.xlu0
        %v825 = vpop.trf.xlu0
        %v826 = vpop.trf.xlu0
        %v827 = vsel %vm794, %v639, %v811
        %vm828 = vcmask 64512
        %829 = vst.msk [vmem:[%s371] sm:$0xff] %vm828, %v827
        %830 = vst.msk [vmem:[%s378] sm:$0xff] %vm828, %v713
        %831 = vst.msk [vmem:[%s385] sm:$0xff] %vm828, %v787
        %v832 = vld [vmem:[#allocation8] sm:$0xff]
        %v833 = vld [vmem:[#allocation8 + $0x8] sm:$0xff]
        %v834 = vld [vmem:[#allocation8 + $0x10] sm:$0x1]
        %835 = vrot.lane.b32.xlu0 %v481, 62
        %v836 = vpop.permute.xlu0 %835
        %vm837 = vcmask 138240
        %v838 = vsel %vm837, %v836, 0
        %v841 = vsel %vm491, %v834, 0
        %843 = vmatprep.subr.mxu0 0.0
        %844 = vmatpush1.msra.mxu0 %v832
        %845 = vmatprep.subr.mxu0 0.0
        %846 = vmatpush1.msra.mxu0 %v833
        %847 = vmatprep.subr.mxu0 0.0
        %848 = vmatpush1.msra.mxu0 %v841
        %849 = vmatprep.subr.mxu0 0.0
        %850 = vmatpush1.msra.mxu0 0.0
        %851 = vmatprep.subr.mxu0 0.0
        %852 = vmatpush1.msra.mxu0 0.0
        %853 = vmatprep.subr.mxu0 0.0
        %854 = vmatpush1.msra.mxu0 0.0
        %855 = vmatprep.subr.mxu0 0.0
        %856 = vmatpush1.msra.mxu0 0.0
        %857 = vmatprep.subr.mxu0 0.0
        %858 = vmatpush1.msra.mxu0 0.0
        %859 = vmatprep.subr.mxu0 0.0
        %860 = vmatpush1.msra.mxu0 0.0
        %861 = vmatprep.subr.mxu0 0.0
        %862 = vmatpush1.msra.mxu0 0.0
        %863 = vmatprep.subr.mxu0 0.0
        %864 = vmatpush1.msra.mxu0 0.0
        %865 = vmatprep.subr.mxu0 0.0
        %866 = vmatpush1.msra.mxu0 0.0
        %867 = vmatprep.subr.mxu0 0.0
        %868 = vmatpush1.msra.mxu0 0.0
        %869 = vmatprep.subr.mxu0 0.0
        %870 = vmatpush1.msra.mxu0 0.0
        %871 = vmatprep.subr.mxu0 0.0
        %872 = vmatpush1.msra.mxu0 0.0
        %873 = vmatprep.subr.mxu0 0.0
        %874 = vmatpush1.msra.mxu0 0.0
        %875 = vmatprep.subr.mxu0 0.0
        %876 = vmatpush1.msra.mxu0 0.0
        %877 = vmatprep.subr.mxu0 0.0
        %878 = vmatpush1.msra.mxu0 0.0
        %879 = vmatprep.subr.mxu0 0.0
        %880 = vmatpush1.msra.mxu0 0.0
        %881 = vmatprep.subr.mxu0 0.0
        %882 = vmatpush1.msra.mxu0 0.0
        %883 = vmatprep.subr.mxu0 0.0
        %884 = vmatpush1.msra.mxu0 0.0
        %885 = vmatprep.subr.mxu0 0.0
        %886 = vmatpush1.msra.mxu0 0.0
        %887 = vmatprep.subr.mxu0 0.0
        %888 = vmatpush1.msra.mxu0 0.0
        %889 = vmatprep.subr.mxu0 0.0
        %890 = vmatpush1.msra.mxu0 0.0
        %891 = vmatprep.subr.mxu0 0.0
        %892 = vmatpush1.msra.mxu0 0.0
        %893 = vmatprep.subr.mxu0 0.0
        %894 = vmatpush1.msra.mxu0 0.0
        %895 = vmatprep.subr.mxu0 0.0
        %896 = vmatpush1.msra.mxu0 0.0
        %897 = vmatprep.subr.mxu0 0.0
        %898 = vmatpush1.msra.mxu0 0.0
        %899 = vmatprep.subr.mxu0 0.0
        %900 = vmatpush1.msra.mxu0 0.0
        %901 = vmatprep.subr.mxu0 0.0
        %902 = vmatpush1.msra.mxu0 0.0
        %903 = vmatprep.subr.mxu0 0.0
        %904 = vmatpush1.msra.mxu0 0.0
        %905 = vmatprep.subr.mxu0 0.0
        %906 = vmatpush1.msra.mxu0 0.0
        %907 = vmatprep.mubr.f32.mxu0 0.0
        %908 = vmatmul.mubr.f32.gmra.mrb[0].mxu0 %v838
        %v909 = vpop.f32.mrb[0].mxu0
        %v910 = vadd.f32 0.0, %v909
        %v911 = vpop.f32.mrb[0].mxu0
        %912 = vdwg.mxu0
        %913 = vrot.lane.b32.xlu0 %v481, 45
        %v914 = vpop.permute.xlu0 %913
        %v916 = vsel %vm837, %v910, 0
        %v918 = vsel %vm837, %v914, 0
        %920 = vmatprep.subr.mxu0 0.0
        %921 = vmatpush1.xpose.msra.mxu0 %v918
        %922 = vmatprep.subr.mxu0 0.0
        %923 = vmatpush1.xpose.msra.mxu0 0.0
        %924 = vmatprep.subr.mxu0 0.0
        %925 = vmatpush1.xpose.msra.mxu0 0.0
        %926 = vmatprep.subr.mxu0 0.0
        %927 = vmatpush1.xpose.msra.mxu0 0.0
        %928 = vmatprep.subr.mxu0 0.0
        %929 = vmatpush1.xpose.msra.mxu0 0.0
        %930 = vmatprep.subr.mxu0 0.0
        %931 = vmatpush1.xpose.msra.mxu0 0.0
        %932 = vmatprep.subr.mxu0 0.0
        %933 = vmatpush1.xpose.msra.mxu0 0.0
        %934 = vmatprep.subr.mxu0 0.0
        %935 = vmatpush1.xpose.msra.mxu0 0.0
        %936 = vmatprep.subr.mxu0 0.0
        %937 = vmatpush1.xpose.msra.mxu0 0.0
        %938 = vmatprep.subr.mxu0 0.0
        %939 = vmatpush1.xpose.msra.mxu0 0.0
        %940 = vmatprep.subr.mxu0 0.0
        %941 = vmatpush1.xpose.msra.mxu0 0.0
        %942 = vmatprep.subr.mxu0 0.0
        %943 = vmatpush1.xpose.msra.mxu0 0.0
        %944 = vmatprep.subr.mxu0 0.0
        %945 = vmatpush1.xpose.msra.mxu0 0.0
        %946 = vmatprep.subr.mxu0 0.0
        %947 = vmatpush1.xpose.msra.mxu0 0.0
        %948 = vmatprep.subr.mxu0 0.0
        %949 = vmatpush1.xpose.msra.mxu0 0.0
        %950 = vmatprep.subr.mxu0 0.0
        %951 = vmatpush1.xpose.msra.mxu0 0.0
        %952 = vmatprep.subr.mxu0 0.0
        %953 = vmatpush1.xpose.msra.mxu0 0.0
        %954 = vmatprep.subr.mxu0 0.0
        %955 = vmatpush1.xpose.msra.mxu0 0.0
        %956 = vmatprep.subr.mxu0 0.0
        %957 = vmatpush1.xpose.msra.mxu0 0.0
        %958 = vmatprep.subr.mxu0 0.0
        %959 = vmatpush1.xpose.msra.mxu0 0.0
        %960 = vmatprep.subr.mxu0 0.0
        %961 = vmatpush1.xpose.msra.mxu0 0.0
        %962 = vmatprep.subr.mxu0 0.0
        %963 = vmatpush1.xpose.msra.mxu0 0.0
        %964 = vmatprep.subr.mxu0 0.0
        %965 = vmatpush1.xpose.msra.mxu0 0.0
        %966 = vmatprep.subr.mxu0 0.0
        %967 = vmatpush1.xpose.msra.mxu0 0.0
        %968 = vmatprep.subr.mxu0 0.0
        %969 = vmatpush1.xpose.msra.mxu0 0.0
        %970 = vmatprep.subr.mxu0 0.0
        %971 = vmatpush1.xpose.msra.mxu0 0.0
        %972 = vmatprep.subr.mxu0 0.0
        %973 = vmatpush1.xpose.msra.mxu0 0.0
        %974 = vmatprep.subr.mxu0 0.0
        %975 = vmatpush1.xpose.msra.mxu0 0.0
        %976 = vmatprep.subr.mxu0 0.0
        %977 = vmatpush1.xpose.msra.mxu0 0.0
        %978 = vmatprep.subr.mxu0 0.0
        %979 = vmatpush1.xpose.msra.mxu0 0.0
        %980 = vmatprep.subr.mxu0 0.0
        %981 = vmatpush1.xpose.msra.mxu0 0.0
        %982 = vmatprep.subr.mxu0 0.0
        %983 = vmatpush1.xpose.msra.mxu0 0.0
        %984 = vmatprep.mubr.f32.mxu0 0.0
        %985 = vmatmul.mubr.f32.gmra.mrb[0].mxu0 %v916
        %v986 = vpop.f32.mrb[0].mxu0
        %v987 = vadd.f32 0.0, %v986
        %v988 = vpop.f32.mrb[0].mxu0
        %989 = vdwg.mxu0
        %990 = vst.msk [vmem:[%s392] sm:$0xff] %vm828, %v987
        %991 = vrot.lane.b32.xlu0 %v910, 111
        %v992 = vpop.permute.xlu0 %991
        %v993 = vsel %vm837, %v992, 0
        %995 = vmatprep.subr.mxu0 0.0
        %996 = vmatpush1.xpose.msra.mxu0 %v918
        %997 = vmatprep.subr.mxu0 0.0
        %998 = vmatpush1.xpose.msra.mxu0 0.0
        %999 = vmatprep.subr.mxu0 0.0
        %1000 = vmatpush1.xpose.msra.mxu0 0.0
        %1001 = vmatprep.subr.mxu0 0.0
        %1002 = vmatpush1.xpose.msra.mxu0 0.0
        %1003 = vmatprep.subr.mxu0 0.0
        %1004 = vmatpush1.xpose.msra.mxu0 0.0
        %1005 = vmatprep.subr.mxu0 0.0
        %1006 = vmatpush1.xpose.msra.mxu0 0.0
        %1007 = vmatprep.subr.mxu0 0.0
        %1008 = vmatpush1.xpose.msra.mxu0 0.0
        %1009 = vmatprep.subr.mxu0 0.0
        %1010 = vmatpush1.xpose.msra.mxu0 0.0
        %1011 = vmatprep.subr.mxu0 0.0
        %1012 = vmatpush1.xpose.msra.mxu0 0.0
        %1013 = vmatprep.subr.mxu0 0.0
        %1014 = vmatpush1.xpose.msra.mxu0 0.0
        %1015 = vmatprep.subr.mxu0 0.0
        %1016 = vmatpush1.xpose.msra.mxu0 0.0
        %1017 = vmatprep.subr.mxu0 0.0
        %1018 = vmatpush1.xpose.msra.mxu0 0.0
        %1019 = vmatprep.subr.mxu0 0.0
        %1020 = vmatpush1.xpose.msra.mxu0 0.0
        %1021 = vmatprep.subr.mxu0 0.0
        %1022 = vmatpush1.xpose.msra.mxu0 0.0
        %1023 = vmatprep.subr.mxu0 0.0
        %1024 = vmatpush1.xpose.msra.mxu0 0.0
        %1025 = vmatprep.subr.mxu0 0.0
        %1026 = vmatpush1.xpose.msra.mxu0 0.0
        %1027 = vmatprep.subr.mxu0 0.0
        %1028 = vmatpush1.xpose.msra.mxu0 0.0
        %1029 = vmatprep.subr.mxu0 0.0
        %1030 = vmatpush1.xpose.msra.mxu0 0.0
        %1031 = vmatprep.subr.mxu0 0.0
        %1032 = vmatpush1.xpose.msra.mxu0 0.0
        %1033 = vmatprep.subr.mxu0 0.0
        %1034 = vmatpush1.xpose.msra.mxu0 0.0
        %1035 = vmatprep.subr.mxu0 0.0
        %1036 = vmatpush1.xpose.msra.mxu0 0.0
        %1037 = vmatprep.subr.mxu0 0.0
        %1038 = vmatpush1.xpose.msra.mxu0 0.0
        %1039 = vmatprep.subr.mxu0 0.0
        %1040 = vmatpush1.xpose.msra.mxu0 0.0
        %1041 = vmatprep.subr.mxu0 0.0
        %1042 = vmatpush1.xpose.msra.mxu0 0.0
        %1043 = vmatprep.subr.mxu0 0.0
        %1044 = vmatpush1.xpose.msra.mxu0 0.0
        %1045 = vmatprep.subr.mxu0 0.0
        %1046 = vmatpush1.xpose.msra.mxu0 0.0
        %1047 = vmatprep.subr.mxu0 0.0
        %1048 = vmatpush1.xpose.msra.mxu0 0.0
        %1049 = vmatprep.subr.mxu0 0.0
        %1050 = vmatpush1.xpose.msra.mxu0 0.0
        %1051 = vmatprep.subr.mxu0 0.0
        %1052 = vmatpush1.xpose.msra.mxu0 0.0
        %1053 = vmatprep.subr.mxu0 0.0
        %1054 = vmatpush1.xpose.msra.mxu0 0.0
        %1055 = vmatprep.subr.mxu0 0.0
        %1056 = vmatpush1.xpose.msra.mxu0 0.0
        %1057 = vmatprep.subr.mxu0 0.0
        %1058 = vmatpush1.xpose.msra.mxu0 0.0
        %1059 = vmatprep.mubr.f32.mxu0 0.0
        %1060 = vmatmul.mubr.f32.gmra.mrb[0].mxu0 %v993
        %v1061 = vpop.f32.mrb[0].mxu0
        %v1062 = vadd.f32 0.0, %v1061
        %v1063 = vpop.f32.mrb[0].mxu0
        %1064 = vdwg.mxu0
        %s1065 = scalar_lea.vmem %s392, 8 [#allocation14]
        %1066 = vst.msk [vmem:[%s1065] sm:$0xff] %vm828, %v1062
        %1067 = vrot.lane.b32.xlu0 %v910, 94
        %v1068 = vpop.permute.xlu0 %1067
        %v1069 = vsel %vm837, %v1068, 0
        %1071 = vmatprep.subr.mxu0 0.0
        %1072 = vmatpush1.xpose.msra.mxu0 %v918
        %1073 = vmatprep.subr.mxu0 0.0
        %1074 = vmatpush1.xpose.msra.mxu0 0.0
        %1075 = vmatprep.subr.mxu0 0.0
        %1076 = vmatpush1.xpose.msra.mxu0 0.0
        %1077 = vmatprep.subr.mxu0 0.0
        %1078 = vmatpush1.xpose.msra.mxu0 0.0
        %1079 = vmatprep.subr.mxu0 0.0
        %1080 = vmatpush1.xpose.msra.mxu0 0.0
        %1081 = vmatprep.subr.mxu0 0.0
        %1082 = vmatpush1.xpose.msra.mxu0 0.0
        %1083 = vmatprep.subr.mxu0 0.0
        %1084 = vmatpush1.xpose.msra.mxu0 0.0
        %1085 = vmatprep.subr.mxu0 0.0
        %1086 = vmatpush1.xpose.msra.mxu0 0.0
        %1087 = vmatprep.subr.mxu0 0.0
        %1088 = vmatpush1.xpose.msra.mxu0 0.0
        %1089 = vmatprep.subr.mxu0 0.0
        %1090 = vmatpush1.xpose.msra.mxu0 0.0
        %1091 = vmatprep.subr.mxu0 0.0
        %1092 = vmatpush1.xpose.msra.mxu0 0.0
        %1093 = vmatprep.subr.mxu0 0.0
        %1094 = vmatpush1.xpose.msra.mxu0 0.0
        %1095 = vmatprep.subr.mxu0 0.0
        %1096 = vmatpush1.xpose.msra.mxu0 0.0
        %1097 = vmatprep.subr.mxu0 0.0
        %1098 = vmatpush1.xpose.msra.mxu0 0.0
        %1099 = vmatprep.subr.mxu0 0.0
        %1100 = vmatpush1.xpose.msra.mxu0 0.0
        %1101 = vmatprep.subr.mxu0 0.0
        %1102 = vmatpush1.xpose.msra.mxu0 0.0
        %1103 = vmatprep.subr.mxu0 0.0
        %1104 = vmatpush1.xpose.msra.mxu0 0.0
        %1105 = vmatprep.subr.mxu0 0.0
        %1106 = vmatpush1.xpose.msra.mxu0 0.0
        %1107 = vmatprep.subr.mxu0 0.0
        %1108 = vmatpush1.xpose.msra.mxu0 0.0
        %1109 = vmatprep.subr.mxu0 0.0
        %1110 = vmatpush1.xpose.msra.mxu0 0.0
        %1111 = vmatprep.subr.mxu0 0.0
        %1112 = vmatpush1.xpose.msra.mxu0 0.0
        %1113 = vmatprep.subr.mxu0 0.0
        %1114 = vmatpush1.xpose.msra.mxu0 0.0
        %1115 = vmatprep.subr.mxu0 0.0
        %1116 = vmatpush1.xpose.msra.mxu0 0.0
        %1117 = vmatprep.subr.mxu0 0.0
        %1118 = vmatpush1.xpose.msra.mxu0 0.0
        %1119 = vmatprep.subr.mxu0 0.0
        %1120 = vmatpush1.xpose.msra.mxu0 0.0
        %1121 = vmatprep.subr.mxu0 0.0
        %1122 = vmatpush1.xpose.msra.mxu0 0.0
        %1123 = vmatprep.subr.mxu0 0.0
        %1124 = vmatpush1.xpose.msra.mxu0 0.0
        %1125 = vmatprep.subr.mxu0 0.0
        %1126 = vmatpush1.xpose.msra.mxu0 0.0
        %1127 = vmatprep.subr.mxu0 0.0
        %1128 = vmatpush1.xpose.msra.mxu0 0.0
        %1129 = vmatprep.subr.mxu0 0.0
        %1130 = vmatpush1.xpose.msra.mxu0 0.0
        %1131 = vmatprep.subr.mxu0 0.0
        %1132 = vmatpush1.xpose.msra.mxu0 0.0
        %1133 = vmatprep.subr.mxu0 0.0
        %1134 = vmatpush1.xpose.msra.mxu0 0.0
        %1135 = vmatprep.mubr.f32.mxu0 0.0
        %1136 = vmatmul.mubr.f32.gmra.mrb[0].mxu0 %v1069
        %v1137 = vpop.f32.mrb[0].mxu0
        %v1138 = vadd.f32 0.0, %v1137
        %v1139 = vpop.f32.mrb[0].mxu0
        %1140 = vdwg.mxu0
        %s1141 = scalar_lea.vmem %s392, 16 [#allocation14]
        %1142 = vst.msk [vmem:[%s1141] sm:$0xff] %vm828, %v1138
        %1143 = vrot.lane.b32.xlu0 %v910, 77
        %v1144 = vpop.permute.xlu0 %1143
        %v1145 = vsel %vm837, %v1144, 0
        %1147 = vmatprep.subr.mxu0 0.0
        %1148 = vmatpush1.xpose.msra.mxu0 %v918
        %1149 = vmatprep.subr.mxu0 0.0
        %1150 = vmatpush1.xpose.msra.mxu0 0.0
        %1151 = vmatprep.subr.mxu0 0.0
        %1152 = vmatpush1.xpose.msra.mxu0 0.0
        %1153 = vmatprep.subr.mxu0 0.0
        %1154 = vmatpush1.xpose.msra.mxu0 0.0
        %1155 = vmatprep.subr.mxu0 0.0
        %1156 = vmatpush1.xpose.msra.mxu0 0.0
        %1157 = vmatprep.subr.mxu0 0.0
        %1158 = vmatpush1.xpose.msra.mxu0 0.0
        %1159 = vmatprep.subr.mxu0 0.0
        %1160 = vmatpush1.xpose.msra.mxu0 0.0
        %1161 = vmatprep.subr.mxu0 0.0
        %1162 = vmatpush1.xpose.msra.mxu0 0.0
        %1163 = vmatprep.subr.mxu0 0.0
        %1164 = vmatpush1.xpose.msra.mxu0 0.0
        %1165 = vmatprep.subr.mxu0 0.0
        %1166 = vmatpush1.xpose.msra.mxu0 0.0
        %1167 = vmatprep.subr.mxu0 0.0
        %1168 = vmatpush1.xpose.msra.mxu0 0.0
        %1169 = vmatprep.subr.mxu0 0.0
        %1170 = vmatpush1.xpose.msra.mxu0 0.0
        %1171 = vmatprep.subr.mxu0 0.0
        %1172 = vmatpush1.xpose.msra.mxu0 0.0
        %1173 = vmatprep.subr.mxu0 0.0
        %1174 = vmatpush1.xpose.msra.mxu0 0.0
        %1175 = vmatprep.subr.mxu0 0.0
        %1176 = vmatpush1.xpose.msra.mxu0 0.0
        %1177 = vmatprep.subr.mxu0 0.0
        %1178 = vmatpush1.xpose.msra.mxu0 0.0
        %1179 = vmatprep.subr.mxu0 0.0
        %1180 = vmatpush1.xpose.msra.mxu0 0.0
        %1181 = vmatprep.subr.mxu0 0.0
        %1182 = vmatpush1.xpose.msra.mxu0 0.0
        %1183 = vmatprep.subr.mxu0 0.0
        %1184 = vmatpush1.xpose.msra.mxu0 0.0
        %1185 = vmatprep.subr.mxu0 0.0
        %1186 = vmatpush1.xpose.msra.mxu0 0.0
        %1187 = vmatprep.subr.mxu0 0.0
        %1188 = vmatpush1.xpose.msra.mxu0 0.0
        %1189 = vmatprep.subr.mxu0 0.0
        %1190 = vmatpush1.xpose.msra.mxu0 0.0
        %1191 = vmatprep.subr.mxu0 0.0
        %1192 = vmatpush1.xpose.msra.mxu0 0.0
        %1193 = vmatprep.subr.mxu0 0.0
        %1194 = vmatpush1.xpose.msra.mxu0 0.0
        %1195 = vmatprep.subr.mxu0 0.0
        %1196 = vmatpush1.xpose.msra.mxu0 0.0
        %1197 = vmatprep.subr.mxu0 0.0
        %1198 = vmatpush1.xpose.msra.mxu0 0.0
        %1199 = vmatprep.subr.mxu0 0.0
        %1200 = vmatpush1.xpose.msra.mxu0 0.0
        %1201 = vmatprep.subr.mxu0 0.0
        %1202 = vmatpush1.xpose.msra.mxu0 0.0
        %1203 = vmatprep.subr.mxu0 0.0
        %1204 = vmatpush1.xpose.msra.mxu0 0.0
        %1205 = vmatprep.subr.mxu0 0.0
        %1206 = vmatpush1.xpose.msra.mxu0 0.0
        %1207 = vmatprep.subr.mxu0 0.0
        %1208 = vmatpush1.xpose.msra.mxu0 0.0
        %1209 = vmatprep.subr.mxu0 0.0
        %1210 = vmatpush1.xpose.msra.mxu0 0.0
        %1211 = vmatprep.mubr.f32.mxu0 0.0
        %1212 = vmatmul.mubr.f32.gmra.mrb[0].mxu0 %v1145
        %v1213 = vpop.f32.mrb[0].mxu0
        %v1214 = vadd.f32 0.0, %v1213
        %v1215 = vpop.f32.mrb[0].mxu0
        %1216 = vdwg.mxu0
        %s1217 = scalar_lea.vmem %s392, 24 [#allocation14]
        %1218 = vst.msk [vmem:[%s1217] sm:$0xff] %vm828, %v1214
        %1219 = vrot.lane.b32.xlu0 %v910, 60
        %v1220 = vpop.permute.xlu0 %1219
        %v1221 = vsel %vm837, %v1220, 0
        %1223 = vmatprep.subr.mxu0 0.0
        %1224 = vmatpush1.xpose.msra.mxu0 %v918
        %1225 = vmatprep.subr.mxu0 0.0
        %1226 = vmatpush1.xpose.msra.mxu0 0.0
        %1227 = vmatprep.subr.mxu0 0.0
        %1228 = vmatpush1.xpose.msra.mxu0 0.0
        %1229 = vmatprep.subr.mxu0 0.0
        %1230 = vmatpush1.xpose.msra.mxu0 0.0
        %1231 = vmatprep.subr.mxu0 0.0
        %1232 = vmatpush1.xpose.msra.mxu0 0.0
        %1233 = vmatprep.subr.mxu0 0.0
        %1234 = vmatpush1.xpose.msra.mxu0 0.0
        %1235 = vmatprep.subr.mxu0 0.0
        %1236 = vmatpush1.xpose.msra.mxu0 0.0
        %1237 = vmatprep.subr.mxu0 0.0
        %1238 = vmatpush1.xpose.msra.mxu0 0.0
        %1239 = vmatprep.subr.mxu0 0.0
        %1240 = vmatpush1.xpose.msra.mxu0 0.0
        %1241 = vmatprep.subr.mxu0 0.0
        %1242 = vmatpush1.xpose.msra.mxu0 0.0
        %1243 = vmatprep.subr.mxu0 0.0
        %1244 = vmatpush1.xpose.msra.mxu0 0.0
        %1245 = vmatprep.subr.mxu0 0.0
        %1246 = vmatpush1.xpose.msra.mxu0 0.0
        %1247 = vmatprep.subr.mxu0 0.0
        %1248 = vmatpush1.xpose.msra.mxu0 0.0
        %1249 = vmatprep.subr.mxu0 0.0
        %1250 = vmatpush1.xpose.msra.mxu0 0.0
        %1251 = vmatprep.subr.mxu0 0.0
        %1252 = vmatpush1.xpose.msra.mxu0 0.0
        %1253 = vmatprep.subr.mxu0 0.0
        %1254 = vmatpush1.xpose.msra.mxu0 0.0
        %1255 = vmatprep.subr.mxu0 0.0
        %1256 = vmatpush1.xpose.msra.mxu0 0.0
        %1257 = vmatprep.subr.mxu0 0.0
        %1258 = vmatpush1.xpose.msra.mxu0 0.0
        %1259 = vmatprep.subr.mxu0 0.0
        %1260 = vmatpush1.xpose.msra.mxu0 0.0
        %1261 = vmatprep.subr.mxu0 0.0
        %1262 = vmatpush1.xpose.msra.mxu0 0.0
        %1263 = vmatprep.subr.mxu0 0.0
        %1264 = vmatpush1.xpose.msra.mxu0 0.0
        %1265 = vmatprep.subr.mxu0 0.0
        %1266 = vmatpush1.xpose.msra.mxu0 0.0
        %1267 = vmatprep.subr.mxu0 0.0
        %1268 = vmatpush1.xpose.msra.mxu0 0.0
        %1269 = vmatprep.subr.mxu0 0.0
        %1270 = vmatpush1.xpose.msra.mxu0 0.0
        %1271 = vmatprep.subr.mxu0 0.0
        %1272 = vmatpush1.xpose.msra.mxu0 0.0
        %1273 = vmatprep.subr.mxu0 0.0
        %1274 = vmatpush1.xpose.msra.mxu0 0.0
        %1275 = vmatprep.subr.mxu0 0.0
        %1276 = vmatpush1.xpose.msra.mxu0 0.0
        %1277 = vmatprep.subr.mxu0 0.0
        %1278 = vmatpush1.xpose.msra.mxu0 0.0
        %1279 = vmatprep.subr.mxu0 0.0
        %1280 = vmatpush1.xpose.msra.mxu0 0.0
        %1281 = vmatprep.subr.mxu0 0.0
        %1282 = vmatpush1.xpose.msra.mxu0 0.0
        %1283 = vmatprep.subr.mxu0 0.0
        %1284 = vmatpush1.xpose.msra.mxu0 0.0
        %1285 = vmatprep.subr.mxu0 0.0
        %1286 = vmatpush1.xpose.msra.mxu0 0.0
        %1287 = vmatprep.mubr.f32.mxu0 0.0
        %1288 = vmatmul.mubr.f32.gmra.mrb[0].mxu0 %v1221
        %v1289 = vpop.f32.mrb[0].mxu0
        %v1290 = vadd.f32 0.0, %v1289
        %v1291 = vpop.f32.mrb[0].mxu0
        %1292 = vdwg.mxu0
        %s1293 = scalar_lea.vmem %s392, 32 [#allocation14]
        %1294 = vst.msk [vmem:[%s1293] sm:$0xff] %vm828, %v1290
        %1295 = vrot.lane.b32.xlu0 %v910, 43
        %v1296 = vpop.permute.xlu0 %1295
        %v1297 = vsel %vm837, %v1296, 0
        %1299 = vmatprep.subr.mxu0 0.0
        %1300 = vmatpush1.xpose.msra.mxu0 %v918
        %1301 = vmatprep.subr.mxu0 0.0
        %1302 = vmatpush1.xpose.msra.mxu0 0.0
        %1303 = vmatprep.subr.mxu0 0.0
        %1304 = vmatpush1.xpose.msra.mxu0 0.0
        %1305 = vmatprep.subr.mxu0 0.0
        %1306 = vmatpush1.xpose.msra.mxu0 0.0
        %1307 = vmatprep.subr.mxu0 0.0
        %1308 = vmatpush1.xpose.msra.mxu0 0.0
        %1309 = vmatprep.subr.mxu0 0.0
        %1310 = vmatpush1.xpose.msra.mxu0 0.0
        %1311 = vmatprep.subr.mxu0 0.0
        %1312 = vmatpush1.xpose.msra.mxu0 0.0
        %1313 = vmatprep.subr.mxu0 0.0
        %1314 = vmatpush1.xpose.msra.mxu0 0.0
        %1315 = vmatprep.subr.mxu0 0.0
        %1316 = vmatpush1.xpose.msra.mxu0 0.0
        %1317 = vmatprep.subr.mxu0 0.0
        %1318 = vmatpush1.xpose.msra.mxu0 0.0
        %1319 = vmatprep.subr.mxu0 0.0
        %1320 = vmatpush1.xpose.msra.mxu0 0.0
        %1321 = vmatprep.subr.mxu0 0.0
        %1322 = vmatpush1.xpose.msra.mxu0 0.0
        %1323 = vmatprep.subr.mxu0 0.0
        %1324 = vmatpush1.xpose.msra.mxu0 0.0
        %1325 = vmatprep.subr.mxu0 0.0
        %1326 = vmatpush1.xpose.msra.mxu0 0.0
        %1327 = vmatprep.subr.mxu0 0.0
        %1328 = vmatpush1.xpose.msra.mxu0 0.0
        %1329 = vmatprep.subr.mxu0 0.0
        %1330 = vmatpush1.xpose.msra.mxu0 0.0
        %1331 = vmatprep.subr.mxu0 0.0
        %1332 = vmatpush1.xpose.msra.mxu0 0.0
        %1333 = vmatprep.subr.mxu0 0.0
        %1334 = vmatpush1.xpose.msra.mxu0 0.0
        %1335 = vmatprep.subr.mxu0 0.0
        %1336 = vmatpush1.xpose.msra.mxu0 0.0
        %1337 = vmatprep.subr.mxu0 0.0
        %1338 = vmatpush1.xpose.msra.mxu0 0.0
        %1339 = vmatprep.subr.mxu0 0.0
        %1340 = vmatpush1.xpose.msra.mxu0 0.0
        %1341 = vmatprep.subr.mxu0 0.0
        %1342 = vmatpush1.xpose.msra.mxu0 0.0
        %1343 = vmatprep.subr.mxu0 0.0
        %1344 = vmatpush1.xpose.msra.mxu0 0.0
        %1345 = vmatprep.subr.mxu0 0.0
        %1346 = vmatpush1.xpose.msra.mxu0 0.0
        %1347 = vmatprep.subr.mxu0 0.0
        %1348 = vmatpush1.xpose.msra.mxu0 0.0
        %1349 = vmatprep.subr.mxu0 0.0
        %1350 = vmatpush1.xpose.msra.mxu0 0.0
        %1351 = vmatprep.subr.mxu0 0.0
        %1352 = vmatpush1.xpose.msra.mxu0 0.0
        %1353 = vmatprep.subr.mxu0 0.0
        %1354 = vmatpush1.xpose.msra.mxu0 0.0
        %1355 = vmatprep.subr.mxu0 0.0
        %1356 = vmatpush1.xpose.msra.mxu0 0.0
        %1357 = vmatprep.subr.mxu0 0.0
        %1358 = vmatpush1.xpose.msra.mxu0 0.0
        %1359 = vmatprep.subr.mxu0 0.0
        %1360 = vmatpush1.xpose.msra.mxu0 0.0
        %1361 = vmatprep.subr.mxu0 0.0
        %1362 = vmatpush1.xpose.msra.mxu0 0.0
        %1363 = vmatprep.mubr.f32.mxu0 0.0
        %1364 = vmatmul.mubr.f32.gmra.mrb[0].mxu0 %v1297
        %v1365 = vpop.f32.mrb[0].mxu0
        %v1366 = vadd.f32 0.0, %v1365
        %v1367 = vpop.f32.mrb[0].mxu0
        %1368 = vdwg.mxu0
        %s1369 = scalar_lea.vmem %s392, 40 [#allocation14]
        %1370 = vst.msk [vmem:[%s1369] sm:$0xff] %vm828, %v1366
        %s1371 = sand.u32 %s152, 1
        %s1372 = scalar_lea.sflag [#allocation4], %s1371
        %s1373 = sand.u32 %s152, 1
        %s1374 = smul.addr %s1373, 8
        %s1375 = scalar_lea.vmem [#allocation10], %s1374
        %s1376 = sand.u32 %s34, 1
        %s1377 = scalar_lea.sflag [#allocation12], %s1376
        %s1378 = sand.u32 %s178, 1
        %s1379 = smul.addr %s1378, 8
        %s1380 = scalar_lea.vmem [#allocation11], %s1379
        %s1381 = sand.u32 %s34, 1
        %s1382 = scalar_lea.sflag [#allocation12], %s1381
        %s1383 = sand.u32 %s204, 1
        %s1384 = smul.addr %s1383, 8
        %s1385 = scalar_lea.vmem [#allocation13], %s1384
        %s1386 = sand.u32 %s230, 1
        %s1387 = scalar_lea.sflag [#allocation15], %s1386
        %s1388 = sand.u32 %s230, 1
        %s1389 = smul.addr %s1388, 48
        %s1390 = scalar_lea.vmem [#allocation14], %s1389
        // Predicated region
        $region57: #{tpu_custom_call.1} parent=39 // pred_check
          %p1391 = pneg %p162
        $region58: #{tpu_custom_call.1} parent=39 // pred_check_branch
          %1393 = sbr.rel (%p1391) target = $region60
        $region59: #{tpu_custom_call.1} parent=39 // pred_region
          %s1395 = ssub.s32 128, 128
          %1396 = vsyncadd %s1372, %s1395
          %s1397 = smul.addr %s34, 128
          %s1398 = scalar_lea.hbm %s5, %s1397
          %s1400 = sshll.u32 %s1375, 4
          %s1401 = int_to_ptr.vmem [resolvable:$true] %s1400
          %1403 = dma.vmem_to_hbm [thread:$0]  %s1401, 128, %s1398, %s1372
        $region60: #{tpu_custom_call.1} parent=39 // pred_fallthru
          _
        // Predicated region
        $region61: #{tpu_custom_call.1} parent=39 // pred_check
          %p1404 = pneg %p188
        $region62: #{tpu_custom_call.1} parent=39 // pred_check_branch
          %1406 = sbr.rel (%p1404) target = $region64
        $region63: #{tpu_custom_call.1} parent=39 // pred_region
          %s1408 = ssub.s32 128, 128
          %1409 = vsyncadd %s1377, %s1408
          %s1410 = smul.addr %s34, 128
          %s1411 = scalar_lea.hbm %s6, %s1410
          %s1413 = sshll.u32 %s1380, 4
          %s1414 = int_to_ptr.vmem [resolvable:$true] %s1413
          %1416 = dma.vmem_to_hbm [thread:$0]  %s1414, 128, %s1411, %s1377
        $region64: #{tpu_custom_call.1} parent=39 // pred_fallthru
          _
        // Predicated region
        $region65: #{tpu_custom_call.1} parent=39 // pred_check
          %p1417 = pneg %p214
        $region66: #{tpu_custom_call.1} parent=39 // pred_check_branch
          %1419 = sbr.rel (%p1417) target = $region68
        $region67: #{tpu_custom_call.1} parent=39 // pred_region
          %s1421 = ssub.s32 128, 128
          %1422 = vsyncadd %s1382, %s1421
          %s1423 = smul.addr %s34, 128
          %s1424 = scalar_lea.hbm %s7, %s1423
          %s1426 = sshll.u32 %s1385, 4
          %s1427 = int_to_ptr.vmem [resolvable:$true] %s1426
          %1429 = dma.vmem_to_hbm [thread:$0]  %s1427, 128, %s1424, %s1382
        $region68: #{tpu_custom_call.1} parent=39 // pred_fallthru
          _
        // Predicated region
        $region69: #{tpu_custom_call.1} parent=39 // pred_check
          %p1430 = pneg %p240
        $region70: #{tpu_custom_call.1} parent=39 // pred_check_branch
          %1432 = sbr.rel (%p1430) target = $region72
        $region71: #{tpu_custom_call.1} parent=39 // pred_region
          %s1434 = ssub.s32 768, 768
          %1435 = vsyncadd %s1387, %s1434
          %s1436 = smul.addr %s34, 6
          %s1437 = smul.addr %s1436, 128
          %s1438 = scalar_lea.hbm %s8, %s1437
          %s1439 = sshll.u32 %s1390, 4
          %s1440 = int_to_ptr.vmem [resolvable:$true] %s1439
          %1445 = dma.vmem_to_hbm [thread:$0]  %s1440, 768, %s1438, %s1387, 128, 128, 8
        $region72: #{tpu_custom_call.1} parent=39 // pred_fallthru
          _
      $region40: #{tpu_custom_call.1} parent=5 // pred_fallthru
        _
      %p1446 = scmp.le.s32.totalorder 2, %s29
      // Predicated region
      $region73: #{tpu_custom_call.1} parent=5 // pred_check
        %p1447 = pneg %p1446
      $region74: #{tpu_custom_call.1} parent=5 // pred_check_branch
        %1449 = sbr.rel (%p1447) target = $region76
      $region75: #{tpu_custom_call.1} parent=5 // pred_region
        %s1450 = ssub.s32 %s29, 2
        // Predicated region
        $region77: #{tpu_custom_call.1} parent=75 // pred_check
          %p1451 = pneg %p168
        $region78: #{tpu_custom_call.1} parent=75 // pred_check_branch
          %1453 = sbr.rel (%p1451) target = $region80
        $region79: #{tpu_custom_call.1} parent=75 // pred_region
          %s1454 = sand.u32 %s153, 1
          %s1455 = scalar_lea.sflag [#allocation4], %s1454
          %s1456 = sand.u32 %s153, 1
          %s1457 = smul.addr %s1456, 8
          %s1458 = scalar_lea.vmem [#allocation10], %s1457
          %1459 = dma.done %s1455, 128
        $region80: #{tpu_custom_call.1} parent=75 // pred_fallthru
          _
        // Predicated region
        $region81: #{tpu_custom_call.1} parent=75 // pred_check
          %p1460 = pneg %p194
        $region82: #{tpu_custom_call.1} parent=75 // pred_check_branch
          %1462 = sbr.rel (%p1460) target = $region84
        $region83: #{tpu_custom_call.1} parent=75 // pred_region
          %s1463 = sand.u32 %s35, 1
          %s1464 = scalar_lea.sflag [#allocation12], %s1463
          %s1465 = sand.u32 %s179, 1
          %s1466 = smul.addr %s1465, 8
          %s1467 = scalar_lea.vmem [#allocation11], %s1466
          %1468 = dma.done %s1464, 128
        $region84: #{tpu_custom_call.1} parent=75 // pred_fallthru
          _
        // Predicated region
        $region85: #{tpu_custom_call.1} parent=75 // pred_check
          %p1469 = pneg %p220
        $region86: #{tpu_custom_call.1} parent=75 // pred_check_branch
          %1471 = sbr.rel (%p1469) target = $region88
        $region87: #{tpu_custom_call.1} parent=75 // pred_region
          %s1472 = sand.u32 %s35, 1
          %s1473 = scalar_lea.sflag [#allocation12], %s1472
          %s1474 = sand.u32 %s205, 1
          %s1475 = smul.addr %s1474, 8
          %s1476 = scalar_lea.vmem [#allocation13], %s1475
          %1477 = dma.done %s1473, 128
        $region88: #{tpu_custom_call.1} parent=75 // pred_fallthru
          _
        // Predicated region
        $region89: #{tpu_custom_call.1} parent=75 // pred_check
          %p1478 = pneg %p246
        $region90: #{tpu_custom_call.1} parent=75 // pred_check_branch
          %1480 = sbr.rel (%p1478) target = $region92
        $region91: #{tpu_custom_call.1} parent=75 // pred_region
          %s1481 = sand.u32 %s231, 1
          %s1482 = scalar_lea.sflag [#allocation15], %s1481
          %s1483 = sand.u32 %s231, 1
          %s1484 = smul.addr %s1483, 48
          %s1485 = scalar_lea.vmem [#allocation14], %s1484
          %1486 = dma.done %s1482, 768
        $region92: #{tpu_custom_call.1} parent=75 // pred_fallthru
          _
      $region76: #{tpu_custom_call.1} parent=5 // pred_fallthru
        _
    $region6: #{tpu_custom_call.1} parent=1 // loop_footer
      %s33 = sadd.s32 1, %s29
    $region7: #{tpu_custom_call.1} parent=1 // loop_footer_branch
      %28 = sbr.rel target = $region3
    $region8: #{tpu_custom_call.1} parent=1 // loop_exit
      _
    %1487 = vsyncpa [#allocation3], 1
    %s1488 = scalar_lea.sflag [#allocation3], 1
    %1489 = vsyncpa %s1488, 1
    %1490 = vsyncpa [#allocation6], 1
    %1491 = vsyncpa [#allocation9], 1
    %1492 = vsyncpa [#allocation4], 1
    %s1493 = scalar_lea.sflag [#allocation4], 1
    %1494 = vsyncpa %s1493, 1
    %1495 = vsyncpa [#allocation12], 1
    %s1496 = scalar_lea.sflag [#allocation12], 1
    %1497 = vsyncpa %s1496, 1
    %1498 = vsyncpa [#allocation15], 1
    %s1499 = scalar_lea.sflag [#allocation15], 1
    %1500 = vsyncpa %s1499, 1

</llo_original>
